<compile_context>
chip_gen: v7x
topology: tpu7x:2x2x1
jax: 0.10.0
libtpu: 0.0.40
codegen_flags: <defaults>
</compile_context>

<pallas_src>
import jax
import jax.numpy as jnp
from jax import lax
from jax.experimental import pallas as pl
from jax.experimental.pallas import tpu as pltpu

# ---- hyper-parameters (stand-ins for the module's global `D`) -------------
MAX_SENT_LEN = 20         # D.max_sent_len
EMBEDDING_DIM = 32        # D.EMBEDDING_DIM
FEATURE_SIZE = 16         # D.FEATURE_SIZE
VOCAB_SIZE = 30           # D.vocab_size  (embedding table has vocab_size + 2 rows)
KW = 5                    # conv kernel height

CONV_OUT_LEN = MAX_SENT_LEN - (KW - 1)    # T = L - 4 = 16
NUM_EMB = VOCAB_SIZE + 2                  # V = 32
BB = 16                                   # sentences per grid step  (M = BB*T = 256)
OUT_PAD = 128                             # lane-dense output width


def cnn_kernel(ids_ref, tw_ref, bc_ref, wf_ref, bf_ref, out_ref):
    """One grid step = BB sentences.

    ids_ref: (BB*T, KW) int32   unfolded token ids: row b*T+t, col i -> ids[b, t+i]
    tw_ref : (KW, V, F) bf16    per-tap (embedding_table @ conv_weight) matrices
    bc_ref : (1, F)  f32        conv bias
    wf_ref : (2, F)  f32        fc weight (PyTorch layout)
    bf_ref : (1, 2)  f32        fc bias
    out_ref: (BB, 128) f32      softmax probs in lanes 0/1, zeros elsewhere
    """
    ids = ids_ref[...]                                                  # (BB*T, KW)
    vocab_iota = lax.broadcasted_iota(                                  # hoisted once
        jnp.int32, (BB * CONV_OUT_LEN, NUM_EMB), 1)

    # Conv as a sum of KW shifted one-hot matmuls (embedding gather folded into tw).
    acc = jnp.zeros((BB * CONV_OUT_LEN, FEATURE_SIZE), jnp.float32)
    for i in range(KW):                                                 # static unroll
        onehot = (ids[:, i:i + 1] == vocab_iota).astype(jnp.bfloat16)   # (BB*T, V)
        acc = acc + jnp.dot(onehot, tw_ref[i],
                            preferred_element_type=jnp.float32)         # (BB*T, F)

    # bias + ReLU, then max-pool over the full temporal extent of each sentence.
    conv = jnp.maximum(acc + bc_ref[...], 0.0)                          # (BB*T, F)
    pooled = jnp.max(conv.reshape(BB, CONV_OUT_LEN, FEATURE_SIZE), axis=1)   # (BB, F)

    # fc1 on the VPU: broadcast-multiply + lane reduce (F=16 -> 2 classes).
    l0 = jnp.sum(pooled * wf_ref[0:1, :], axis=1, keepdims=True) + bf_ref[:, 0:1]
    l1 = jnp.sum(pooled * wf_ref[1:2, :], axis=1, keepdims=True) + bf_ref[:, 1:2]

    # softmax over the 2 classes (f32 epilogue, exact normalization).
    m = jnp.maximum(l0, l1)
    e0 = jnp.exp(l0 - m)
    e1 = jnp.exp(l1 - m)
    denom = e0 + e1
    p0 = e0 / denom
    p1 = e1 / denom

    # lane-dense store: probs live in lanes 0/1 of a 128-lane slab (no masked vst).
    lane = lax.broadcasted_iota(jnp.int32, (BB, OUT_PAD), 1)
    out_ref[...] = jnp.where(lane == 0, p0, jnp.where(lane == 1, p1, 0.0))


def prepare_params(emb_table, conv_w, conv_b, fc_w, fc_b):
    """One-time (hoisted) parameter re-layout; NOT traced per forward call."""
    # tw[i, v, f] = sum_e emb_table[v, e] * conv_w[f, 0, i, e]
    tw = jnp.einsum('ve,fie->ivf',
                    emb_table.astype(jnp.float32),
                    conv_w[:, 0].astype(jnp.float32)).astype(jnp.bfloat16)
    bc = conv_b.reshape(1, FEATURE_SIZE).astype(jnp.float32)
    wf = fc_w.astype(jnp.float32)                      # (2, F)
    bf = fc_b.reshape(1, 2).astype(jnp.float32)
    return tw, bc, wf, bf


@jax.jit
def cnn_forward(token_ids, tw, bc, wf, bf):
    """token_ids: (B, MAX_SENT_LEN) int32 -> (B, 2) f32 softmax probabilities."""
    B = token_ids.shape[0]
    Bp = ((B + BB - 1) // BB) * BB
    if Bp != B:
        token_ids = jnp.pad(token_ids, ((0, Bp - B), (0, 0)))

    # Unfold token ids for the 5 conv taps: ids_unf[b*T + t, i] = token_ids[b, t + i].
    pos = jnp.arange(CONV_OUT_LEN)[:, None] + jnp.arange(KW)[None, :]       # (T, KW)
    ids_unf = token_ids[:, pos].reshape(Bp * CONV_OUT_LEN, KW).astype(jnp.int32)

    out = pl.pallas_call(
        cnn_kernel,
        out_shape=jax.ShapeDtypeStruct((Bp, OUT_PAD), jnp.float32),
        grid_spec=pltpu.PrefetchScalarGridSpec(
            num_scalar_prefetch=0,
            grid=(Bp // BB,),
            in_specs=[
                pl.BlockSpec((BB * CONV_OUT_LEN, KW), lambda b: (b, 0)),
                pl.BlockSpec((KW, NUM_EMB, FEATURE_SIZE), lambda b: (0, 0, 0)),
                pl.BlockSpec((1, FEATURE_SIZE), lambda b: (0, 0)),
                pl.BlockSpec((2, FEATURE_SIZE), lambda b: (0, 0)),
                pl.BlockSpec((1, 2), lambda b: (0, 0)),
            ],
            out_specs=pl.BlockSpec((BB, OUT_PAD), lambda b: (b, 0)),
        ),
        compiler_params=pltpu.CompilerParams(
            dimension_semantics=("parallel",)),      # v7x: shard batch over 2 TCs
    )(ids_unf, tw, bc, wf, bf)
    return out[:B, :2]


def reference_forward(token_ids, emb_table, conv_w, conv_b, fc_w, fc_b):
    """Pure-JAX f32 reference of the PyTorch module (batched over sentences)."""
    emb = emb_table[token_ids].astype(jnp.float32)                      # (B, L, E)
    taps = jnp.stack([emb[:, i:i + CONV_OUT_LEN, :] for i in range(KW)], axis=2)
    conv = jnp.einsum('btie,fie->btf', taps, conv_w[:, 0]) + conv_b     # (B, T, F)
    pooled = jnp.max(jax.nn.relu(conv), axis=1)                         # (B, F)
    logits = pooled @ fc_w.T + fc_b                                     # (B, 2)
    return jax.nn.softmax(logits, axis=-1)


if __name__ == "__main__":
    key = jax.random.PRNGKey(0)
    k_tok, k_emb, k_cw, k_cb, k_fw, k_fb = jax.random.split(key, 6)

    B = 64   # batch of sentences processed in one pallas_call (grid = 4 blocks of 16)

    # deterministic synthetic parameters (shapes match nn.Module __init__)
    emb_table = jax.random.normal(k_emb, (NUM_EMB, EMBEDDING_DIM), jnp.float32)
    conv_w = 0.1 * jax.random.normal(k_cw, (FEATURE_SIZE, 1, KW, EMBEDDING_DIM), jnp.float32)
    conv_b = 0.1 * jax.random.normal(k_cb, (FEATURE_SIZE,), jnp.float32)
    fc_w = 0.1 * jax.random.normal(k_fw, (2, FEATURE_SIZE), jnp.float32)
    fc_b = 0.1 * jax.random.normal(k_fb, (2,), jnp.float32)

    # input: a batch of sentences of token ids (original module = batch of 1 each)
    token_ids = jax.random.randint(k_tok, (B, MAX_SENT_LEN), 0, NUM_EMB, jnp.int32)

    # one-time weight re-layout (hoisted out of the per-call hot path)
    tw, bc, wf, bf = prepare_params(emb_table, conv_w, conv_b, fc_w, fc_b)

    prob = cnn_forward(token_ids, tw, bc, wf, bf)
    prob = jax.block_until_ready(prob)

    assert prob.shape == (B, 2)
    assert bool(jnp.all(jnp.abs(jnp.sum(prob, axis=1) - 1.0) < 1e-4))

    ref = reference_forward(token_ids, emb_table, conv_w, conv_b, fc_w, fc_b)
    max_err = float(jnp.max(jnp.abs(prob - ref)))
    assert max_err < 5e-2, f"max abs error vs reference = {max_err}"

    print("KERNEL_OK")
</pallas_src>

<mosaic_0001>
module attributes {stable_mosaic.version = 11 : i64} {
  func.func @cnn_kernel(%arg0: i32, %arg1: memref<256x5xi32, #tpu.memory_space<vmem>>, %arg2: memref<5x32x16xbf16, #tpu.memory_space<vmem>>, %arg3: memref<1x16xf32, #tpu.memory_space<vmem>>, %arg4: memref<2x16xf32, #tpu.memory_space<vmem>>, %arg5: memref<1x2xf32, #tpu.memory_space<vmem>>, %arg6: memref<16x128xf32, #tpu.memory_space<vmem>>) attributes {dimension_semantics = [#tpu.dimension_semantics<parallel>], iteration_bounds = array<i64: 4>, scalar_prefetch = 0 : i64, scratch_operands = 0 : i64, tpu.core_type = #tpu.core_type<tc>, window_params = [{transform_indices = @transform_0, window_bounds = array<i64: 256, 5>}, {pipeline_mode = #tpu.pipeline_mode<synchronous>, transform_indices = @transform_1, window_bounds = array<i64: 5, 32, 16>}, {pipeline_mode = #tpu.pipeline_mode<synchronous>, transform_indices = @transform_2, window_bounds = array<i64: 1, 16>}, {pipeline_mode = #tpu.pipeline_mode<synchronous>, transform_indices = @transform_3, window_bounds = array<i64: 2, 16>}, {pipeline_mode = #tpu.pipeline_mode<synchronous>, transform_indices = @transform_4, window_bounds = array<i64: 1, 2>}, {transform_indices = @transform_5, window_bounds = array<i64: 16, 128>}]} {
    %c0 = arith.constant 0 : index
    %c0_0 = arith.constant 0 : index
    %0 = vector.load %arg1[%c0, %c0_0] : memref<256x5xi32, #tpu.memory_space<vmem>>, vector<256x5xi32>
    %1 = tpu.iota {dimensions = array<i32: 1>} : vector<256x32xi32>
    %cst = arith.constant 0.000000e+00 : f32
    %2 = vector.broadcast %cst : f32 to vector<256x16xf32>
    %3 = vector.extract_strided_slice %0 {offsets = [0, 0], sizes = [256, 1], strides = [1, 1]} : vector<256x5xi32> to vector<256x1xi32>
    %4 = vector.broadcast %3 : vector<256x1xi32> to vector<256x32xi32>
    %5 = arith.cmpi eq, %4, %1 : vector<256x32xi32>
    %6 = arith.extui %5 : vector<256x32xi1> to vector<256x32xi32>
    %7 = arith.sitofp %6 : vector<256x32xi32> to vector<256x32xf32>
    %8 = arith.truncf %7 : vector<256x32xf32> to vector<256x32xbf16>
    %c0_1 = arith.constant 0 : index
    %c0_2 = arith.constant 0 : index
    %c0_3 = arith.constant 0 : index
    %9 = vector.load %arg2[%c0_1, %c0_2, %c0_3] : memref<5x32x16xbf16, #tpu.memory_space<vmem>>, vector<1x32x16xbf16>
    %10 = vector.shape_cast %9 : vector<1x32x16xbf16> to vector<32x16xbf16>
    %cst_4 = arith.constant dense<0.000000e+00> : vector<256x16xf32>
    %11 = tpu.matmul %8, %10, %cst_4 {dimension_numbers = #tpu.dot_dimension_numbers<[1], [0], [0], [1], [0, 0, 1, 1], [], []>} : vector<256x32xbf16>, vector<32x16xbf16>, vector<256x16xf32> -> vector<256x16xf32>
    %12 = arith.addf %2, %11 : vector<256x16xf32>
    %13 = vector.extract_strided_slice %0 {offsets = [0, 1], sizes = [256, 1], strides = [1, 1]} : vector<256x5xi32> to vector<256x1xi32>
    %14 = vector.broadcast %13 : vector<256x1xi32> to vector<256x32xi32>
    %15 = arith.cmpi eq, %14, %1 : vector<256x32xi32>
    %16 = arith.extui %15 : vector<256x32xi1> to vector<256x32xi32>
    %17 = arith.sitofp %16 : vector<256x32xi32> to vector<256x32xf32>
    %18 = arith.truncf %17 : vector<256x32xf32> to vector<256x32xbf16>
    %c1 = arith.constant 1 : index
    %c0_5 = arith.constant 0 : index
    %c0_6 = arith.constant 0 : index
    %19 = vector.load %arg2[%c1, %c0_5, %c0_6] : memref<5x32x16xbf16, #tpu.memory_space<vmem>>, vector<1x32x16xbf16>
    %20 = vector.shape_cast %19 : vector<1x32x16xbf16> to vector<32x16xbf16>
    %cst_7 = arith.constant dense<0.000000e+00> : vector<256x16xf32>
    %21 = tpu.matmul %18, %20, %cst_7 {dimension_numbers = #tpu.dot_dimension_numbers<[1], [0], [0], [1], [0, 0, 1, 1], [], []>} : vector<256x32xbf16>, vector<32x16xbf16>, vector<256x16xf32> -> vector<256x16xf32>
    %22 = arith.addf %12, %21 : vector<256x16xf32>
    %23 = vector.extract_strided_slice %0 {offsets = [0, 2], sizes = [256, 1], strides = [1, 1]} : vector<256x5xi32> to vector<256x1xi32>
    %24 = vector.broadcast %23 : vector<256x1xi32> to vector<256x32xi32>
    %25 = arith.cmpi eq, %24, %1 : vector<256x32xi32>
    %26 = arith.extui %25 : vector<256x32xi1> to vector<256x32xi32>
    %27 = arith.sitofp %26 : vector<256x32xi32> to vector<256x32xf32>
    %28 = arith.truncf %27 : vector<256x32xf32> to vector<256x32xbf16>
    %c2 = arith.constant 2 : index
    %c0_8 = arith.constant 0 : index
    %c0_9 = arith.constant 0 : index
    %29 = vector.load %arg2[%c2, %c0_8, %c0_9] : memref<5x32x16xbf16, #tpu.memory_space<vmem>>, vector<1x32x16xbf16>
    %30 = vector.shape_cast %29 : vector<1x32x16xbf16> to vector<32x16xbf16>
    %cst_10 = arith.constant dense<0.000000e+00> : vector<256x16xf32>
    %31 = tpu.matmul %28, %30, %cst_10 {dimension_numbers = #tpu.dot_dimension_numbers<[1], [0], [0], [1], [0, 0, 1, 1], [], []>} : vector<256x32xbf16>, vector<32x16xbf16>, vector<256x16xf32> -> vector<256x16xf32>
    %32 = arith.addf %22, %31 : vector<256x16xf32>
    %33 = vector.extract_strided_slice %0 {offsets = [0, 3], sizes = [256, 1], strides = [1, 1]} : vector<256x5xi32> to vector<256x1xi32>
    %34 = vector.broadcast %33 : vector<256x1xi32> to vector<256x32xi32>
    %35 = arith.cmpi eq, %34, %1 : vector<256x32xi32>
    %36 = arith.extui %35 : vector<256x32xi1> to vector<256x32xi32>
    %37 = arith.sitofp %36 : vector<256x32xi32> to vector<256x32xf32>
    %38 = arith.truncf %37 : vector<256x32xf32> to vector<256x32xbf16>
    %c3 = arith.constant 3 : index
    %c0_11 = arith.constant 0 : index
    %c0_12 = arith.constant 0 : index
    %39 = vector.load %arg2[%c3, %c0_11, %c0_12] : memref<5x32x16xbf16, #tpu.memory_space<vmem>>, vector<1x32x16xbf16>
    %40 = vector.shape_cast %39 : vector<1x32x16xbf16> to vector<32x16xbf16>
    %cst_13 = arith.constant dense<0.000000e+00> : vector<256x16xf32>
    %41 = tpu.matmul %38, %40, %cst_13 {dimension_numbers = #tpu.dot_dimension_numbers<[1], [0], [0], [1], [0, 0, 1, 1], [], []>} : vector<256x32xbf16>, vector<32x16xbf16>, vector<256x16xf32> -> vector<256x16xf32>
    %42 = arith.addf %32, %41 : vector<256x16xf32>
    %43 = vector.extract_strided_slice %0 {offsets = [0, 4], sizes = [256, 1], strides = [1, 1]} : vector<256x5xi32> to vector<256x1xi32>
    %44 = vector.broadcast %43 : vector<256x1xi32> to vector<256x32xi32>
    %45 = arith.cmpi eq, %44, %1 : vector<256x32xi32>
    %46 = arith.extui %45 : vector<256x32xi1> to vector<256x32xi32>
    %47 = arith.sitofp %46 : vector<256x32xi32> to vector<256x32xf32>
    %48 = arith.truncf %47 : vector<256x32xf32> to vector<256x32xbf16>
    %c4 = arith.constant 4 : index
    %c0_14 = arith.constant 0 : index
    %c0_15 = arith.constant 0 : index
    %49 = vector.load %arg2[%c4, %c0_14, %c0_15] : memref<5x32x16xbf16, #tpu.memory_space<vmem>>, vector<1x32x16xbf16>
    %50 = vector.shape_cast %49 : vector<1x32x16xbf16> to vector<32x16xbf16>
    %cst_16 = arith.constant dense<0.000000e+00> : vector<256x16xf32>
    %51 = tpu.matmul %48, %50, %cst_16 {dimension_numbers = #tpu.dot_dimension_numbers<[1], [0], [0], [1], [0, 0, 1, 1], [], []>} : vector<256x32xbf16>, vector<32x16xbf16>, vector<256x16xf32> -> vector<256x16xf32>
    %52 = arith.addf %42, %51 : vector<256x16xf32>
    %c0_17 = arith.constant 0 : index
    %c0_18 = arith.constant 0 : index
    %53 = vector.load %arg3[%c0_17, %c0_18] : memref<1x16xf32, #tpu.memory_space<vmem>>, vector<1x16xf32>
    %54 = vector.broadcast %53 : vector<1x16xf32> to vector<256x16xf32>
    %55 = arith.addf %52, %54 : vector<256x16xf32>
    %cst_19 = arith.constant 0.000000e+00 : f32
    %56 = vector.broadcast %cst_19 : f32 to vector<256x16xf32>
    %57 = arith.maximumf %55, %56 : vector<256x16xf32>
    %58 = vector.shape_cast %57 : vector<256x16xf32> to vector<16x16x16xf32>
    %cst_20 = arith.constant dense<0xFF800000> : vector<16x16xf32>
    %59 = vector.multi_reduction <maximumf>, %58, %cst_20 [1] : vector<16x16x16xf32> to vector<16x16xf32>
    %c0_21 = arith.constant 0 : index
    %c0_22 = arith.constant 0 : index
    %60 = vector.load %arg4[%c0_21, %c0_22] : memref<2x16xf32, #tpu.memory_space<vmem>>, vector<1x16xf32>
    %61 = vector.broadcast %60 : vector<1x16xf32> to vector<16x16xf32>
    %62 = arith.mulf %59, %61 : vector<16x16xf32>
    %cst_23 = arith.constant dense<0.000000e+00> : vector<16xf32>
    %63 = vector.multi_reduction <add>, %62, %cst_23 [1] : vector<16x16xf32> to vector<16xf32>
    %64 = vector.shape_cast %63 : vector<16xf32> to vector<16x1xf32>
    %c0_24 = arith.constant 0 : index
    %c0_25 = arith.constant 0 : index
    %65 = vector.load %arg5[%c0_24, %c0_25] : memref<1x2xf32, #tpu.memory_space<vmem>>, vector<1x1xf32>
    %66 = vector.broadcast %65 : vector<1x1xf32> to vector<16x1xf32>
    %67 = arith.addf %64, %66 : vector<16x1xf32>
    %c1_26 = arith.constant 1 : index
    %c0_27 = arith.constant 0 : index
    %68 = vector.load %arg4[%c1_26, %c0_27] : memref<2x16xf32, #tpu.memory_space<vmem>>, vector<1x16xf32>
    %69 = vector.broadcast %68 : vector<1x16xf32> to vector<16x16xf32>
    %70 = arith.mulf %59, %69 : vector<16x16xf32>
    %cst_28 = arith.constant dense<0.000000e+00> : vector<16xf32>
    %71 = vector.multi_reduction <add>, %70, %cst_28 [1] : vector<16x16xf32> to vector<16xf32>
    %72 = vector.shape_cast %71 : vector<16xf32> to vector<16x1xf32>
    %c0_29 = arith.constant 0 : index
    %c1_30 = arith.constant 1 : index
    %73 = vector.load %arg5[%c0_29, %c1_30] : memref<1x2xf32, #tpu.memory_space<vmem>>, vector<1x1xf32>
    %74 = vector.broadcast %73 : vector<1x1xf32> to vector<16x1xf32>
    %75 = arith.addf %72, %74 : vector<16x1xf32>
    %76 = arith.maximumf %67, %75 : vector<16x1xf32>
    %77 = arith.subf %67, %76 : vector<16x1xf32>
    %78 = math.exp %77 : vector<16x1xf32>
    %79 = arith.subf %75, %76 : vector<16x1xf32>
    %80 = math.exp %79 : vector<16x1xf32>
    %81 = arith.addf %78, %80 : vector<16x1xf32>
    %82 = arith.divf %78, %81 : vector<16x1xf32>
    %83 = arith.divf %80, %81 : vector<16x1xf32>
    %84 = tpu.iota {dimensions = array<i32: 1>} : vector<16x128xi32>
    %c0_i32 = arith.constant 0 : i32
    %85 = vector.broadcast %c0_i32 : i32 to vector<16x128xi32>
    %86 = arith.cmpi eq, %84, %85 : vector<16x128xi32>
    %c1_i32 = arith.constant 1 : i32
    %87 = vector.broadcast %c1_i32 : i32 to vector<16x128xi32>
    %88 = arith.cmpi eq, %84, %87 : vector<16x128xi32>
    %cst_31 = arith.constant 0.000000e+00 : f32
    %89 = vector.shape_cast %83 : vector<16x1xf32> to vector<16x1xf32>
    %90 = vector.broadcast %89 : vector<16x1xf32> to vector<16x128xf32>
    %91 = vector.broadcast %cst_31 : f32 to vector<16x128xf32>
    %92 = arith.select %88, %90, %91 : vector<16x128xi1>, vector<16x128xf32>
    %93 = vector.shape_cast %82 : vector<16x1xf32> to vector<16x1xf32>
    %94 = vector.broadcast %93 : vector<16x1xf32> to vector<16x128xf32>
    %95 = arith.select %86, %94, %92 : vector<16x128xi1>, vector<16x128xf32>
    %c0_32 = arith.constant 0 : index
    %c0_33 = arith.constant 0 : index
    %96 = vector.load %arg6[%c0_32, %c0_33] : memref<16x128xf32, #tpu.memory_space<vmem>>, vector<16x128xf32>
    tpu.vector_store %arg6[%c0_32, %c0_33], %95 {strides = array<i32>} : memref<16x128xf32, #tpu.memory_space<vmem>>, vector<16x128xf32>,
    return
  }
  func.func @transform_0(%arg0: i32) -> (i32, i32) {
    %c0_i32 = arith.constant 0 : i32
    %c0_i32_0 = arith.constant 0 : i32
    return %arg0, %c0_i32 : i32, i32
  }
  func.func @transform_1(%arg0: i32) -> (i32, i32, i32) {
    %c0_i32 = arith.constant 0 : i32
    %c0_i32_0 = arith.constant 0 : i32
    %c0_i32_1 = arith.constant 0 : i32
    %c0_i32_2 = arith.constant 0 : i32
    return %c0_i32, %c0_i32_0, %c0_i32_1 : i32, i32, i32
  }
  func.func @transform_2(%arg0: i32) -> (i32, i32) {
    %c0_i32 = arith.constant 0 : i32
    %c0_i32_0 = arith.constant 0 : i32
    %c0_i32_1 = arith.constant 0 : i32
    return %c0_i32, %c0_i32_0 : i32, i32
  }
  func.func @transform_3(%arg0: i32) -> (i32, i32) {
    %c0_i32 = arith.constant 0 : i32
    %c0_i32_0 = arith.constant 0 : i32
    %c0_i32_1 = arith.constant 0 : i32
    return %c0_i32, %c0_i32_0 : i32, i32
  }
  func.func @transform_4(%arg0: i32) -> (i32, i32) {
    %c0_i32 = arith.constant 0 : i32
    %c0_i32_0 = arith.constant 0 : i32
    %c0_i32_1 = arith.constant 0 : i32
    return %c0_i32, %c0_i32_0 : i32, i32
  }
  func.func @transform_5(%arg0: i32) -> (i32, i32) {
    %c0_i32 = arith.constant 0 : i32
    %c0_i32_0 = arith.constant 0 : i32
    return %arg0, %c0_i32 : i32, i32
  }
}

</mosaic_0001>

<llo_original>
// kernel: cnn_forward.1
$region0: #{cnn_forward.1}
  #allocation0 [shape = 'u32[]', space=smem, size = 0x4, offset = 0x4, fixed_abs, tag = 'smem constant byte address 0x4 - core index']
  #allocation1 [shape = 'u32[144,128]{1,0:T(1,128)}', space=vmem, size = 0x12000, scoped, tag = 'internal scratch']
  %s0 = inlined_call_operand.vmem [shape: s32[1024,5], index: 0, kind: input, shape index: {}]
  %s1 = inlined_call_operand.vmem [shape: bf16[5,32,16], index: 1, kind: input, shape index: {}]
  %s2 = inlined_call_operand.vmem [shape: f32[1,16], index: 2, kind: input, shape index: {}]
  %s3 = inlined_call_operand.vmem [shape: f32[2,16], index: 3, kind: input, shape index: {}]
  %s4 = inlined_call_operand.vmem [shape: f32[1,2], index: 4, kind: input, shape index: {}]
  %s5 = inlined_call_operand.vmem [shape: f32[64,128], index: 5, kind: output, shape index: {}]
  %s6 = sld [smem:[#allocation0]]
  $region53: #{cnn_forward.1} parent=0
    _
  %s8 = ssub.s32 1, %s6
  %s9 = scalar_select 0, %s8, %s6
  loop: start=0, step=1, limit=6
  $region2: #{cnn_forward.1} parent=0 // loop_pre_header
    _
  $region3: #{cnn_forward.1} parent=0 // loop_header
    %s11 = sphi 0, %s15
    %p12 = scmp.ge.s32.totalorder %s11, 6
    %s21 = sphi 0, %s23
    %s24 = sphi 0, %s21
    %s25 = sphi 0, %s24
    %s41 = sphi 0, %s25
    %s45 = sphi 0, %s45
    %s47 = sphi 0, %s45
    %s48 = sphi 0, %s47
    %s62 = sphi 0, %s48
    %s66 = sphi 0, %s66
    %s68 = sphi 0, %s66
    %s69 = sphi 0, %s68
    %s83 = sphi 0, %s69
    %s87 = sphi 0, %s87
    %s89 = sphi 0, %s87
    %s90 = sphi 0, %s89
    %s104 = sphi 0, %s90
    %s108 = sphi 0, %s108
    %s110 = sphi 0, %s108
    %s111 = sphi 0, %s110
    %s125 = sphi 0, %s111
    %s131 = sphi 0, %s133
    %s134 = sphi 0, %s131
    %s135 = sphi 0, %s134
    %s151 = sphi 0, %s135
  $region4: #{cnn_forward.1} parent=0 // loop_header_branch
    %14 = sbr.rel (%p12) target = $region8
  $region5: #{cnn_forward.1} parent=0 // loop_body
    %s16 = ssub.s32 %s11, 1
    %s17 = ssub.s32 %s11, 2
    %s18 = sadd.s32 %s11, 1
    %s19 = ssub.s32 %s11, %s18
    %p20 = scmp.eq.s32.totalorder %s19, 0
    %s22 = sadd.s32 %s21, 1
    %s23 = scalar_select %p20, %s21, %s22
    %p26 = pneg %p20
    %p27 = scmp.eq.s32.totalorder %s11, 3
    %p28 = por %p26, %p27
    %p29 = scmp.ne.s32.totalorder %s21, %s24
    %p30 = scmp.eq.s32.totalorder %s11, 0
    %p31 = por %p29, %p30
    %p32 = scmp.ne.s32.totalorder %s21, %s24
    %p33 = scmp.eq.s32.totalorder %s16, 3
    %p34 = por %p32, %p33
    %p35 = scmp.ne.s32.totalorder %s24, %s25
    %p36 = scmp.eq.s32.totalorder %s16, 0
    %p37 = por %p35, %p36
    %p38 = scmp.ne.s32.totalorder %s24, %s25
    %p39 = scmp.eq.s32.totalorder %s17, 3
    %p40 = por %p38, %p39
    %p42 = scmp.ne.s32.totalorder %s25, %s41
    %p43 = scmp.eq.s32.totalorder %s17, 0
    %p44 = por %p42, %p43
    %s46 = sadd.s32 %s45, 1
    %p49 = scmp.eq.s32.totalorder %s11, 3
    %p50 = scmp.ne.s32.totalorder %s45, %s47
    %p51 = scmp.eq.s32.totalorder %s11, 0
    %p52 = por %p50, %p51
    %p53 = scmp.ne.s32.totalorder %s45, %s47
    %p54 = scmp.eq.s32.totalorder %s16, 3
    %p55 = por %p53, %p54
    %p56 = scmp.ne.s32.totalorder %s47, %s48
    %p57 = scmp.eq.s32.totalorder %s16, 0
    %p58 = por %p56, %p57
    %p59 = scmp.ne.s32.totalorder %s47, %s48
    %p60 = scmp.eq.s32.totalorder %s17, 3
    %p61 = por %p59, %p60
    %p63 = scmp.ne.s32.totalorder %s48, %s62
    %p64 = scmp.eq.s32.totalorder %s17, 0
    %p65 = por %p63, %p64
    %s67 = sadd.s32 %s66, 1
    %p70 = scmp.eq.s32.totalorder %s11, 3
    %p71 = scmp.ne.s32.totalorder %s66, %s68
    %p72 = scmp.eq.s32.totalorder %s11, 0
    %p73 = por %p71, %p72
    %p74 = scmp.ne.s32.totalorder %s66, %s68
    %p75 = scmp.eq.s32.totalorder %s16, 3
    %p76 = por %p74, %p75
    %p77 = scmp.ne.s32.totalorder %s68, %s69
    %p78 = scmp.eq.s32.totalorder %s16, 0
    %p79 = por %p77, %p78
    %p80 = scmp.ne.s32.totalorder %s68, %s69
    %p81 = scmp.eq.s32.totalorder %s17, 3
    %p82 = por %p80, %p81
    %p84 = scmp.ne.s32.totalorder %s69, %s83
    %p85 = scmp.eq.s32.totalorder %s17, 0
    %p86 = por %p84, %p85
    %s88 = sadd.s32 %s87, 1
    %p91 = scmp.eq.s32.totalorder %s11, 3
    %p92 = scmp.ne.s32.totalorder %s87, %s89
    %p93 = scmp.eq.s32.totalorder %s11, 0
    %p94 = por %p92, %p93
    %p95 = scmp.ne.s32.totalorder %s87, %s89
    %p96 = scmp.eq.s32.totalorder %s16, 3
    %p97 = por %p95, %p96
    %p98 = scmp.ne.s32.totalorder %s89, %s90
    %p99 = scmp.eq.s32.totalorder %s16, 0
    %p100 = por %p98, %p99
    %p101 = scmp.ne.s32.totalorder %s89, %s90
    %p102 = scmp.eq.s32.totalorder %s17, 3
    %p103 = por %p101, %p102
    %p105 = scmp.ne.s32.totalorder %s90, %s104
    %p106 = scmp.eq.s32.totalorder %s17, 0
    %p107 = por %p105, %p106
    %s109 = sadd.s32 %s108, 1
    %p112 = scmp.eq.s32.totalorder %s11, 3
    %p113 = scmp.ne.s32.totalorder %s108, %s110
    %p114 = scmp.eq.s32.totalorder %s11, 0
    %p115 = por %p113, %p114
    %p116 = scmp.ne.s32.totalorder %s108, %s110
    %p117 = scmp.eq.s32.totalorder %s16, 3
    %p118 = por %p116, %p117
    %p119 = scmp.ne.s32.totalorder %s110, %s111
    %p120 = scmp.eq.s32.totalorder %s16, 0
    %p121 = por %p119, %p120
    %p122 = scmp.ne.s32.totalorder %s110, %s111
    %p123 = scmp.eq.s32.totalorder %s17, 3
    %p124 = por %p122, %p123
    %p126 = scmp.ne.s32.totalorder %s111, %s125
    %p127 = scmp.eq.s32.totalorder %s17, 0
    %p128 = por %p126, %p127
    %s129 = ssub.s32 %s11, %s18
    %p130 = scmp.eq.s32.totalorder %s129, 0
    %s132 = sadd.s32 %s131, 1
    %s133 = scalar_select %p130, %s131, %s132
    %p136 = pneg %p130
    %p137 = scmp.eq.s32.totalorder %s11, 3
    %p138 = por %p136, %p137
    %p139 = scmp.ne.s32.totalorder %s131, %s134
    %p140 = scmp.eq.s32.totalorder %s11, 0
    %p141 = por %p139, %p140
    %p142 = scmp.ne.s32.totalorder %s131, %s134
    %p143 = scmp.eq.s32.totalorder %s16, 3
    %p144 = por %p142, %p143
    %p145 = scmp.ne.s32.totalorder %s134, %s135
    %p146 = scmp.eq.s32.totalorder %s16, 0
    %p147 = por %p145, %p146
    %p148 = scmp.ne.s32.totalorder %s134, %s135
    %p149 = scmp.eq.s32.totalorder %s17, 3
    %p150 = por %p148, %p149
    %p152 = scmp.ne.s32.totalorder %s135, %s151
    %p153 = scmp.eq.s32.totalorder %s17, 0
    %p154 = por %p152, %p153
    %p155 = scmp.le.s32.totalorder 1, %s11
    %p156 = scmp.lt.s32.totalorder %s11, 5
    %p157 = pnand %p155, %p156
    %p158 = pneg %p157
    // Predicated region
    $region9: #{cnn_forward.1} parent=5 // pred_check
      _
    $region10: #{cnn_forward.1} parent=5 // pred_check_branch
      %160 = sbr.rel (%p157) target = $region12
    $region11: #{cnn_forward.1} parent=5 // pred_region
      %s161 = ssub.s32 %s11, 1
      // Predicated region
      $region13: #{cnn_forward.1} parent=11 // pred_check
        %p162 = pneg %p58
      $region14: #{cnn_forward.1} parent=11 // pred_check_branch
        %164 = sbr.rel (%p162) target = $region16
      $region15: #{cnn_forward.1} parent=11 // pred_region
        _
      $region16: #{cnn_forward.1} parent=11 // pred_fallthru
        _
      // Predicated region
      $region17: #{cnn_forward.1} parent=11 // pred_check
        %p165 = pneg %p79
      $region18: #{cnn_forward.1} parent=11 // pred_check_branch
        %167 = sbr.rel (%p165) target = $region20
      $region19: #{cnn_forward.1} parent=11 // pred_region
        _
      $region20: #{cnn_forward.1} parent=11 // pred_fallthru
        _
      // Predicated region
      $region21: #{cnn_forward.1} parent=11 // pred_check
        %p168 = pneg %p100
      $region22: #{cnn_forward.1} parent=11 // pred_check_branch
        %170 = sbr.rel (%p168) target = $region24
      $region23: #{cnn_forward.1} parent=11 // pred_region
        _
      $region24: #{cnn_forward.1} parent=11 // pred_fallthru
        _
      // Predicated region
      $region25: #{cnn_forward.1} parent=11 // pred_check
        %p171 = pneg %p121
      $region26: #{cnn_forward.1} parent=11 // pred_check_branch
        %173 = sbr.rel (%p171) target = $region28
      $region27: #{cnn_forward.1} parent=11 // pred_region
        _
      $region28: #{cnn_forward.1} parent=11 // pred_fallthru
        _
    $region12: #{cnn_forward.1} parent=5 // pred_fallthru
      _
    %p174 = scmp.lt.s32.totalorder %s11, 4
    // Predicated region
    $region29: #{cnn_forward.1} parent=5 // pred_check
      %p175 = pneg %p174
    $region30: #{cnn_forward.1} parent=5 // pred_check_branch
      %177 = sbr.rel (%p175) target = $region32
    $region31: #{cnn_forward.1} parent=5 // pred_region
      // Predicated region
      $region33: #{cnn_forward.1} parent=31 // pred_check
        %p178 = pneg %p31
      $region34: #{cnn_forward.1} parent=31 // pred_check_branch
        %180 = sbr.rel (%p178) target = $region36
      $region35: #{cnn_forward.1} parent=31 // pred_region
        %s181 = smul.u32 32, %s11
        %p182 = scmp.lt.s32.totalorder %s181, 127
        %s183 = scalar_select %p182, %s181, 127
        %s184 = smul.addr %s183, 8
        %s185 = scalar_lea.vmem %s0, %s184
        %s186 = smul.u32 32, %s11
      $region36: #{cnn_forward.1} parent=31 // pred_fallthru
        _
    $region32: #{cnn_forward.1} parent=5 // pred_fallthru
      _
    %p187 = scmp.le.s32.totalorder 1, %s11
    %p188 = scmp.lt.s32.totalorder %s11, 5
    %p189 = pnand %p187, %p188
    %p190 = pneg %p189
    // Predicated region
    $region37: #{cnn_forward.1} parent=5 // pred_check
      _
    $region38: #{cnn_forward.1} parent=5 // pred_check_branch
      %192 = sbr.rel (%p189) target = $region40
    $region39: #{cnn_forward.1} parent=5 // pred_region
      %s193 = ssub.s32 %s11, 1
      %s194 = smul.u32 32, %s16
      %p195 = scmp.lt.s32.totalorder %s194, 127
      %s196 = scalar_select %p195, %s194, 127
      %s197 = smul.addr %s196, 8
      %s198 = scalar_lea.vmem %s0, %s197
      %p199 = pneg %p37
      %p200 = pneg %p34
      %p201 = pneg %p58
      %p202 = pneg %p55
      %p203 = pneg %p79
      %p204 = pneg %p76
      %p205 = pneg %p100
      %p206 = pneg %p97
      %p207 = pneg %p121
      %p208 = pneg %p118
      %p209 = pneg %p147
      %p210 = pneg %p144
      %s211 = smul.u32 2, %s16
      %p212 = scmp.lt.s32.totalorder %s211, 7
      %s213 = scalar_select %p212, %s211, 7
      %s214 = smul.addr %s213, 8
      %s215 = scalar_lea.vmem %s5, %s214
      %s216 = smul.u32 32, %s16
      %p217 = scmp.lt.s32.totalorder %s216, 127
      %s218 = scalar_select %p217, %s216, 127
      %s219 = smul.addr %s218, 8
      %s220 = scalar_lea.vmem %s0, %s219
      %s221 = smul.u32 32, %s16
      %s222 = smul.u32 2, %s16
      %p223 = scmp.lt.s32.totalorder %s222, 7
      %s224 = scalar_select %p223, %s222, 7
      %s225 = smul.addr %s224, 8
      %s226 = scalar_lea.vmem %s5, %s225
      %s227 = smul.u32 2, %s16
      %v229 = vld [vmem:[%s220] sm:$0xff]
      %v230 = vld [vmem:[%s220 + $0x8] sm:$0xff]
      %v231 = vld [vmem:[%s220 + $0x10] sm:$0xff]
      %v232 = vld [vmem:[%s220 + $0x18] sm:$0xff]
      %v233 = vld [vmem:[%s220 + $0x20] sm:$0xff]
      %v234 = vld [vmem:[%s220 + $0x28] sm:$0xff]
      %v235 = vld [vmem:[%s220 + $0x30] sm:$0xff]
      %v236 = vld [vmem:[%s220 + $0x38] sm:$0xff]
      %v237 = vld [vmem:[%s220 + $0x40] sm:$0xff]
      %v238 = vld [vmem:[%s220 + $0x48] sm:$0xff]
      %v239 = vld [vmem:[%s220 + $0x50] sm:$0xff]
      %v240 = vld [vmem:[%s220 + $0x58] sm:$0xff]
      %v241 = vld [vmem:[%s220 + $0x60] sm:$0xff]
      %v242 = vld [vmem:[%s220 + $0x68] sm:$0xff]
      %v243 = vld [vmem:[%s220 + $0x70] sm:$0xff]
      %v244 = vld [vmem:[%s220 + $0x78] sm:$0xff]
      %v245 = vld [vmem:[%s220 + $0x80] sm:$0xff]
      %v246 = vld [vmem:[%s220 + $0x88] sm:$0xff]
      %v247 = vld [vmem:[%s220 + $0x90] sm:$0xff]
      %v248 = vld [vmem:[%s220 + $0x98] sm:$0xff]
      %v249 = vld [vmem:[%s220 + $0xa0] sm:$0xff]
      %v250 = vld [vmem:[%s220 + $0xa8] sm:$0xff]
      %v251 = vld [vmem:[%s220 + $0xb0] sm:$0xff]
      %v252 = vld [vmem:[%s220 + $0xb8] sm:$0xff]
      %v253 = vld [vmem:[%s220 + $0xc0] sm:$0xff]
      %v254 = vld [vmem:[%s220 + $0xc8] sm:$0xff]
      %v255 = vld [vmem:[%s220 + $0xd0] sm:$0xff]
      %v256 = vld [vmem:[%s220 + $0xd8] sm:$0xff]
      %v257 = vld [vmem:[%s220 + $0xe0] sm:$0xff]
      %v258 = vld [vmem:[%s220 + $0xe8] sm:$0xff]
      %v259 = vld [vmem:[%s220 + $0xf0] sm:$0xff]
      %v260 = vld [vmem:[%s220 + $0xf8] sm:$0xff]
      %v261 = vlaneseq
      %v262 = vand.u32 %v261, 127
      %263 = vset.pattern.permute.xlu0 0
      %264 = vperm.xlu0 %263, %v229
      %v265 = vpop.permute.xlu0 %264
      %266 = vset.pattern.permute.xlu0 0
      %267 = vperm.xlu0 %266, %v230
      %v268 = vpop.permute.xlu0 %267
      %269 = vset.pattern.permute.xlu0 0
      %270 = vperm.xlu0 %269, %v231
      %v271 = vpop.permute.xlu0 %270
      %272 = vset.pattern.permute.xlu0 0
      %273 = vperm.xlu0 %272, %v232
      %v274 = vpop.permute.xlu0 %273
      %275 = vset.pattern.permute.xlu0 0
      %276 = vperm.xlu0 %275, %v233
      %v277 = vpop.permute.xlu0 %276
      %278 = vset.pattern.permute.xlu0 0
      %279 = vperm.xlu0 %278, %v234
      %v280 = vpop.permute.xlu0 %279
      %281 = vset.pattern.permute.xlu0 0
      %282 = vperm.xlu0 %281, %v235
      %v283 = vpop.permute.xlu0 %282
      %284 = vset.pattern.permute.xlu0 0
      %285 = vperm.xlu0 %284, %v236
      %v286 = vpop.permute.xlu0 %285
      %287 = vset.pattern.permute.xlu0 0
      %288 = vperm.xlu0 %287, %v237
      %v289 = vpop.permute.xlu0 %288
      %290 = vset.pattern.permute.xlu0 0
      %291 = vperm.xlu0 %290, %v238
      %v292 = vpop.permute.xlu0 %291
      %293 = vset.pattern.permute.xlu0 0
      %294 = vperm.xlu0 %293, %v239
      %v295 = vpop.permute.xlu0 %294
      %296 = vset.pattern.permute.xlu0 0
      %297 = vperm.xlu0 %296, %v240
      %v298 = vpop.permute.xlu0 %297
      %299 = vset.pattern.permute.xlu0 0
      %300 = vperm.xlu0 %299, %v241
      %v301 = vpop.permute.xlu0 %300
      %302 = vset.pattern.permute.xlu0 0
      %303 = vperm.xlu0 %302, %v242
      %v304 = vpop.permute.xlu0 %303
      %305 = vset.pattern.permute.xlu0 0
      %306 = vperm.xlu0 %305, %v243
      %v307 = vpop.permute.xlu0 %306
      %308 = vset.pattern.permute.xlu0 0
      %309 = vperm.xlu0 %308, %v244
      %v310 = vpop.permute.xlu0 %309
      %311 = vset.pattern.permute.xlu0 0
      %312 = vperm.xlu0 %311, %v245
      %v313 = vpop.permute.xlu0 %312
      %314 = vset.pattern.permute.xlu0 0
      %315 = vperm.xlu0 %314, %v246
      %v316 = vpop.permute.xlu0 %315
      %317 = vset.pattern.permute.xlu0 0
      %318 = vperm.xlu0 %317, %v247
      %v319 = vpop.permute.xlu0 %318
      %320 = vset.pattern.permute.xlu0 0
      %321 = vperm.xlu0 %320, %v248
      %v322 = vpop.permute.xlu0 %321
      %323 = vset.pattern.permute.xlu0 0
      %324 = vperm.xlu0 %323, %v249
      %v325 = vpop.permute.xlu0 %324
      %326 = vset.pattern.permute.xlu0 0
      %327 = vperm.xlu0 %326, %v250
      %v328 = vpop.permute.xlu0 %327
      %329 = vset.pattern.permute.xlu0 0
      %330 = vperm.xlu0 %329, %v251
      %v331 = vpop.permute.xlu0 %330
      %332 = vset.pattern.permute.xlu0 0
      %333 = vperm.xlu0 %332, %v252
      %v334 = vpop.permute.xlu0 %333
      %335 = vset.pattern.permute.xlu0 0
      %336 = vperm.xlu0 %335, %v253
      %v337 = vpop.permute.xlu0 %336
      %338 = vset.pattern.permute.xlu0 0
      %339 = vperm.xlu0 %338, %v254
      %v340 = vpop.permute.xlu0 %339
      %341 = vset.pattern.permute.xlu0 0
      %342 = vperm.xlu0 %341, %v255
      %v343 = vpop.permute.xlu0 %342
      %344 = vset.pattern.permute.xlu0 0
      %345 = vperm.xlu0 %344, %v256
      %v346 = vpop.permute.xlu0 %345
      %347 = vset.pattern.permute.xlu0 0
      %348 = vperm.xlu0 %347, %v257
      %v349 = vpop.permute.xlu0 %348
      %350 = vset.pattern.permute.xlu0 0
      %351 = vperm.xlu0 %350, %v258
      %v352 = vpop.permute.xlu0 %351
      %353 = vset.pattern.permute.xlu0 0
      %354 = vperm.xlu0 %353, %v259
      %v355 = vpop.permute.xlu0 %354
      %356 = vset.pattern.permute.xlu0 0
      %357 = vperm.xlu0 %356, %v260
      %v358 = vpop.permute.xlu0 %357
      %vm359 = vcmp.eq.s32.totalorder %v265, %v262
      %vm360 = vcmp.eq.s32.totalorder %v268, %v262
      %vm361 = vcmp.eq.s32.totalorder %v271, %v262
      %vm362 = vcmp.eq.s32.totalorder %v274, %v262
      %vm363 = vcmp.eq.s32.totalorder %v277, %v262
      %vm364 = vcmp.eq.s32.totalorder %v280, %v262
      %vm365 = vcmp.eq.s32.totalorder %v283, %v262
      %vm366 = vcmp.eq.s32.totalorder %v286, %v262
      %vm367 = vcmp.eq.s32.totalorder %v289, %v262
      %vm368 = vcmp.eq.s32.totalorder %v292, %v262
      %vm369 = vcmp.eq.s32.totalorder %v295, %v262
      %vm370 = vcmp.eq.s32.totalorder %v298, %v262
      %vm371 = vcmp.eq.s32.totalorder %v301, %v262
      %vm372 = vcmp.eq.s32.totalorder %v304, %v262
      %vm373 = vcmp.eq.s32.totalorder %v307, %v262
      %vm374 = vcmp.eq.s32.totalorder %v310, %v262
      %vm375 = vcmp.eq.s32.totalorder %v313, %v262
      %vm376 = vcmp.eq.s32.totalorder %v316, %v262
      %vm377 = vcmp.eq.s32.totalorder %v319, %v262
      %vm378 = vcmp.eq.s32.totalorder %v322, %v262
      %vm379 = vcmp.eq.s32.totalorder %v325, %v262
      %vm380 = vcmp.eq.s32.totalorder %v328, %v262
      %vm381 = vcmp.eq.s32.totalorder %v331, %v262
      %vm382 = vcmp.eq.s32.totalorder %v334, %v262
      %vm383 = vcmp.eq.s32.totalorder %v337, %v262
      %vm384 = vcmp.eq.s32.totalorder %v340, %v262
      %vm385 = vcmp.eq.s32.totalorder %v343, %v262
      %vm386 = vcmp.eq.s32.totalorder %v346, %v262
      %vm387 = vcmp.eq.s32.totalorder %v349, %v262
      %vm388 = vcmp.eq.s32.totalorder %v352, %v262
      %vm389 = vcmp.eq.s32.totalorder %v355, %v262
      %vm390 = vcmp.eq.s32.totalorder %v358, %v262
      %v391 = vsel %vm359, 1, 0
      %v392 = vsel %vm360, 1, 0
      %v393 = vsel %vm361, 1, 0
      %v394 = vsel %vm362, 1, 0
      %v395 = vsel %vm363, 1, 0
      %v396 = vsel %vm364, 1, 0
      %v397 = vsel %vm365, 1, 0
      %v398 = vsel %vm366, 1, 0
      %v399 = vsel %vm367, 1, 0
      %v400 = vsel %vm368, 1, 0
      %v401 = vsel %vm369, 1, 0
      %v402 = vsel %vm370, 1, 0
      %v403 = vsel %vm371, 1, 0
      %v404 = vsel %vm372, 1, 0
      %v405 = vsel %vm373, 1, 0
      %v406 = vsel %vm374, 1, 0
      %v407 = vsel %vm375, 1, 0
      %v408 = vsel %vm376, 1, 0
      %v409 = vsel %vm377, 1, 0
      %v410 = vsel %vm378, 1, 0
      %v411 = vsel %vm379, 1, 0
      %v412 = vsel %vm380, 1, 0
      %v413 = vsel %vm381, 1, 0
      %v414 = vsel %vm382, 1, 0
      %v415 = vsel %vm383, 1, 0
      %v416 = vsel %vm384, 1, 0
      %v417 = vsel %vm385, 1, 0
      %v418 = vsel %vm386, 1, 0
      %v419 = vsel %vm387, 1, 0
      %v420 = vsel %vm388, 1, 0
      %v421 = vsel %vm389, 1, 0
      %v422 = vsel %vm390, 1, 0
      %v423 = vcvt.s32.f32 %v391
      %v424 = vcvt.s32.f32 %v392
      %v425 = vcvt.s32.f32 %v393
      %v426 = vcvt.s32.f32 %v394
      %v427 = vcvt.s32.f32 %v395
      %v428 = vcvt.s32.f32 %v396
      %v429 = vcvt.s32.f32 %v397
      %v430 = vcvt.s32.f32 %v398
      %v431 = vcvt.s32.f32 %v399
      %v432 = vcvt.s32.f32 %v400
      %v433 = vcvt.s32.f32 %v401
      %v434 = vcvt.s32.f32 %v402
      %v435 = vcvt.s32.f32 %v403
      %v436 = vcvt.s32.f32 %v404
      %v437 = vcvt.s32.f32 %v405
      %v438 = vcvt.s32.f32 %v406
      %v439 = vcvt.s32.f32 %v407
      %v440 = vcvt.s32.f32 %v408
      %v441 = vcvt.s32.f32 %v409
      %v442 = vcvt.s32.f32 %v410
      %v443 = vcvt.s32.f32 %v411
      %v444 = vcvt.s32.f32 %v412
      %v445 = vcvt.s32.f32 %v413
      %v446 = vcvt.s32.f32 %v414
      %v447 = vcvt.s32.f32 %v415
      %v448 = vcvt.s32.f32 %v416
      %v449 = vcvt.s32.f32 %v417
      %v450 = vcvt.s32.f32 %v418
      %v451 = vcvt.s32.f32 %v419
      %v452 = vcvt.s32.f32 %v420
      %v453 = vcvt.s32.f32 %v421
      %v454 = vcvt.s32.f32 %v422
      %v455 = vpack.c.bf16 %v424, %v423
      %v456 = vpack.c.bf16 %v426, %v425
      %v457 = vpack.c.bf16 %v428, %v427
      %v458 = vpack.c.bf16 %v430, %v429
      %v459 = vpack.c.bf16 %v432, %v431
      %v460 = vpack.c.bf16 %v434, %v433
      %v461 = vpack.c.bf16 %v436, %v435
      %v462 = vpack.c.bf16 %v438, %v437
      %v463 = vpack.c.bf16 %v440, %v439
      %v464 = vpack.c.bf16 %v442, %v441
      %v465 = vpack.c.bf16 %v444, %v443
      %v466 = vpack.c.bf16 %v446, %v445
      %v467 = vpack.c.bf16 %v448, %v447
      %v468 = vpack.c.bf16 %v450, %v449
      %v469 = vpack.c.bf16 %v452, %v451
      %v470 = vpack.c.bf16 %v454, %v453
      %v471 = vld [vmem:[%s1] sm:$0xf]
      %v472 = vld [vmem:[%s1 + $0x4] sm:$0xf]
      %v473 = vld [vmem:[%s1 + $0x8] sm:$0xf]
      %v474 = vld [vmem:[%s1 + $0xc] sm:$0xf]
      %475 = vset.pattern.permute.xlu0 1
      %476 = vperm.xlu0 %475, %v229
      %v477 = vpop.permute.xlu0 %476
      %478 = vset.pattern.permute.xlu0 1
      %479 = vperm.xlu0 %478, %v230
      %v480 = vpop.permute.xlu0 %479
      %481 = vset.pattern.permute.xlu0 1
      %482 = vperm.xlu0 %481, %v231
      %v483 = vpop.permute.xlu0 %482
      %484 = vset.pattern.permute.xlu0 1
      %485 = vperm.xlu0 %484, %v232
      %v486 = vpop.permute.xlu0 %485
      %487 = vset.pattern.permute.xlu0 1
      %488 = vperm.xlu0 %487, %v233
      %v489 = vpop.permute.xlu0 %488
      %490 = vset.pattern.permute.xlu0 1
      %491 = vperm.xlu0 %490, %v234
      %v492 = vpop.permute.xlu0 %491
      %493 = vset.pattern.permute.xlu0 1
      %494 = vperm.xlu0 %493, %v235
      %v495 = vpop.permute.xlu0 %494
      %496 = vset.pattern.permute.xlu0 1
      %497 = vperm.xlu0 %496, %v236
      %v498 = vpop.permute.xlu0 %497
      %499 = vset.pattern.permute.xlu0 1
      %500 = vperm.xlu0 %499, %v237
      %v501 = vpop.permute.xlu0 %500
      %502 = vset.pattern.permute.xlu0 1
      %503 = vperm.xlu0 %502, %v238
      %v504 = vpop.permute.xlu0 %503
      %505 = vset.pattern.permute.xlu0 1
      %506 = vperm.xlu0 %505, %v239
      %v507 = vpop.permute.xlu0 %506
      %508 = vset.pattern.permute.xlu0 1
      %509 = vperm.xlu0 %508, %v240
      %v510 = vpop.permute.xlu0 %509
      %511 = vset.pattern.permute.xlu0 1
      %512 = vperm.xlu0 %511, %v241
      %v513 = vpop.permute.xlu0 %512
      %514 = vset.pattern.permute.xlu0 1
      %515 = vperm.xlu0 %514, %v242
      %v516 = vpop.permute.xlu0 %515
      %517 = vset.pattern.permute.xlu0 1
      %518 = vperm.xlu0 %517, %v243
      %v519 = vpop.permute.xlu0 %518
      %520 = vset.pattern.permute.xlu0 1
      %521 = vperm.xlu0 %520, %v244
      %v522 = vpop.permute.xlu0 %521
      %523 = vset.pattern.permute.xlu0 1
      %524 = vperm.xlu0 %523, %v245
      %v525 = vpop.permute.xlu0 %524
      %526 = vset.pattern.permute.xlu0 1
      %527 = vperm.xlu0 %526, %v246
      %v528 = vpop.permute.xlu0 %527
      %529 = vset.pattern.permute.xlu0 1
      %530 = vperm.xlu0 %529, %v247
      %v531 = vpop.permute.xlu0 %530
      %532 = vset.pattern.permute.xlu0 1
      %533 = vperm.xlu0 %532, %v248
      %v534 = vpop.permute.xlu0 %533
      %535 = vset.pattern.permute.xlu0 1
      %536 = vperm.xlu0 %535, %v249
      %v537 = vpop.permute.xlu0 %536
      %538 = vset.pattern.permute.xlu0 1
      %539 = vperm.xlu0 %538, %v250
      %v540 = vpop.permute.xlu0 %539
      %541 = vset.pattern.permute.xlu0 1
      %542 = vperm.xlu0 %541, %v251
      %v543 = vpop.permute.xlu0 %542
      %544 = vset.pattern.permute.xlu0 1
      %545 = vperm.xlu0 %544, %v252
      %v546 = vpop.permute.xlu0 %545
      %547 = vset.pattern.permute.xlu0 1
      %548 = vperm.xlu0 %547, %v253
      %v549 = vpop.permute.xlu0 %548
      %550 = vset.pattern.permute.xlu0 1
      %551 = vperm.xlu0 %550, %v254
      %v552 = vpop.permute.xlu0 %551
      %553 = vset.pattern.permute.xlu0 1
      %554 = vperm.xlu0 %553, %v255
      %v555 = vpop.permute.xlu0 %554
      %556 = vset.pattern.permute.xlu0 1
      %557 = vperm.xlu0 %556, %v256
      %v558 = vpop.permute.xlu0 %557
      %559 = vset.pattern.permute.xlu0 1
      %560 = vperm.xlu0 %559, %v257
      %v561 = vpop.permute.xlu0 %560
      %562 = vset.pattern.permute.xlu0 1
      %563 = vperm.xlu0 %562, %v258
      %v564 = vpop.permute.xlu0 %563
      %565 = vset.pattern.permute.xlu0 1
      %566 = vperm.xlu0 %565, %v259
      %v567 = vpop.permute.xlu0 %566
      %568 = vset.pattern.permute.xlu0 1
      %569 = vperm.xlu0 %568, %v260
      %v570 = vpop.permute.xlu0 %569
      %vm571 = vcmp.eq.s32.totalorder %v477, %v262
      %vm572 = vcmp.eq.s32.totalorder %v480, %v262
      %vm573 = vcmp.eq.s32.totalorder %v483, %v262
      %vm574 = vcmp.eq.s32.totalorder %v486, %v262
      %vm575 = vcmp.eq.s32.totalorder %v489, %v262
      %vm576 = vcmp.eq.s32.totalorder %v492, %v262
      %vm577 = vcmp.eq.s32.totalorder %v495, %v262
      %vm578 = vcmp.eq.s32.totalorder %v498, %v262
      %vm579 = vcmp.eq.s32.totalorder %v501, %v262
      %vm580 = vcmp.eq.s32.totalorder %v504, %v262
      %vm581 = vcmp.eq.s32.totalorder %v507, %v262
      %vm582 = vcmp.eq.s32.totalorder %v510, %v262
      %vm583 = vcmp.eq.s32.totalorder %v513, %v262
      %vm584 = vcmp.eq.s32.totalorder %v516, %v262
      %vm585 = vcmp.eq.s32.totalorder %v519, %v262
      %vm586 = vcmp.eq.s32.totalorder %v522, %v262
      %vm587 = vcmp.eq.s32.totalorder %v525, %v262
      %vm588 = vcmp.eq.s32.totalorder %v528, %v262
      %vm589 = vcmp.eq.s32.totalorder %v531, %v262
      %vm590 = vcmp.eq.s32.totalorder %v534, %v262
      %vm591 = vcmp.eq.s32.totalorder %v537, %v262
      %vm592 = vcmp.eq.s32.totalorder %v540, %v262
      %vm593 = vcmp.eq.s32.totalorder %v543, %v262
      %vm594 = vcmp.eq.s32.totalorder %v546, %v262
      %vm595 = vcmp.eq.s32.totalorder %v549, %v262
      %vm596 = vcmp.eq.s32.totalorder %v552, %v262
      %vm597 = vcmp.eq.s32.totalorder %v555, %v262
      %vm598 = vcmp.eq.s32.totalorder %v558, %v262
      %vm599 = vcmp.eq.s32.totalorder %v561, %v262
      %vm600 = vcmp.eq.s32.totalorder %v564, %v262
      %vm601 = vcmp.eq.s32.totalorder %v567, %v262
      %vm602 = vcmp.eq.s32.totalorder %v570, %v262
      %v603 = vsel %vm571, 1, 0
      %v604 = vsel %vm572, 1, 0
      %v605 = vsel %vm573, 1, 0
      %v606 = vsel %vm574, 1, 0
      %v607 = vsel %vm575, 1, 0
      %v608 = vsel %vm576, 1, 0
      %v609 = vsel %vm577, 1, 0
      %v610 = vsel %vm578, 1, 0
      %v611 = vsel %vm579, 1, 0
      %v612 = vsel %vm580, 1, 0
      %v613 = vsel %vm581, 1, 0
      %v614 = vsel %vm582, 1, 0
      %v615 = vsel %vm583, 1, 0
      %v616 = vsel %vm584, 1, 0
      %v617 = vsel %vm585, 1, 0
      %v618 = vsel %vm586, 1, 0
      %v619 = vsel %vm587, 1, 0
      %v620 = vsel %vm588, 1, 0
      %v621 = vsel %vm589, 1, 0
      %v622 = vsel %vm590, 1, 0
      %v623 = vsel %vm591, 1, 0
      %v624 = vsel %vm592, 1, 0
      %v625 = vsel %vm593, 1, 0
      %v626 = vsel %vm594, 1, 0
      %v627 = vsel %vm595, 1, 0
      %v628 = vsel %vm596, 1, 0
      %v629 = vsel %vm597, 1, 0
      %v630 = vsel %vm598, 1, 0
      %v631 = vsel %vm599, 1, 0
      %v632 = vsel %vm600, 1, 0
      %v633 = vsel %vm601, 1, 0
      %v634 = vsel %vm602, 1, 0
      %v635 = vcvt.s32.f32 %v603
      %v636 = vcvt.s32.f32 %v604
      %v637 = vcvt.s32.f32 %v605
      %v638 = vcvt.s32.f32 %v606
      %v639 = vcvt.s32.f32 %v607
      %v640 = vcvt.s32.f32 %v608
      %v641 = vcvt.s32.f32 %v609
      %v642 = vcvt.s32.f32 %v610
      %v643 = vcvt.s32.f32 %v611
      %v644 = vcvt.s32.f32 %v612
      %v645 = vcvt.s32.f32 %v613
      %v646 = vcvt.s32.f32 %v614
      %v647 = vcvt.s32.f32 %v615
      %v648 = vcvt.s32.f32 %v616
      %v649 = vcvt.s32.f32 %v617
      %v650 = vcvt.s32.f32 %v618
      %v651 = vcvt.s32.f32 %v619
      %v652 = vcvt.s32.f32 %v620
      %v653 = vcvt.s32.f32 %v621
      %v654 = vcvt.s32.f32 %v622
      %v655 = vcvt.s32.f32 %v623
      %v656 = vcvt.s32.f32 %v624
      %v657 = vcvt.s32.f32 %v625
      %v658 = vcvt.s32.f32 %v626
      %v659 = vcvt.s32.f32 %v627
      %v660 = vcvt.s32.f32 %v628
      %v661 = vcvt.s32.f32 %v629
      %v662 = vcvt.s32.f32 %v630
      %v663 = vcvt.s32.f32 %v631
      %v664 = vcvt.s32.f32 %v632
      %v665 = vcvt.s32.f32 %v633
      %v666 = vcvt.s32.f32 %v634
      %v667 = vpack.c.bf16 %v636, %v635
      %v668 = vpack.c.bf16 %v638, %v637
      %v669 = vpack.c.bf16 %v640, %v639
      %v670 = vpack.c.bf16 %v642, %v641
      %v671 = vpack.c.bf16 %v644, %v643
      %v672 = vpack.c.bf16 %v646, %v645
      %v673 = vpack.c.bf16 %v648, %v647
      %v674 = vpack.c.bf16 %v650, %v649
      %v675 = vpack.c.bf16 %v652, %v651
      %v676 = vpack.c.bf16 %v654, %v653
      %v677 = vpack.c.bf16 %v656, %v655
      %v678 = vpack.c.bf16 %v658, %v657
      %v679 = vpack.c.bf16 %v660, %v659
      %v680 = vpack.c.bf16 %v662, %v661
      %v681 = vpack.c.bf16 %v664, %v663
      %v682 = vpack.c.bf16 %v666, %v665
      %s683 = scalar_lea.vmem %s1, 16
      %v684 = vld [vmem:[%s683] sm:$0xf]
      %v685 = vld [vmem:[%s683 + $0x4] sm:$0xf]
      %v686 = vld [vmem:[%s683 + $0x8] sm:$0xf]
      %v687 = vld [vmem:[%s683 + $0xc] sm:$0xf]
      %v692 = vunpack.c.l.b16 %v684
      %v693 = vunpack.c.l.b16 %v685
      %v694 = vunpack.c.l.b16 %v686
      %v695 = vunpack.c.l.b16 %v687
      %v696 = vpack.c.b16 %v693, %v692
      %v697 = vpack.c.b16 %v695, %v694
      %vm700 = vcmask 261120
      %v702 = vsel %vm700, %v667, 0
      %v705 = vsel %vm700, %v668, 0
      %v708 = vsel %vm700, %v669, 0
      %v711 = vsel %vm700, %v670, 0
      %v714 = vsel %vm700, %v671, 0
      %v717 = vsel %vm700, %v672, 0
      %v720 = vsel %vm700, %v673, 0
      %v723 = vsel %vm700, %v674, 0
      %v726 = vsel %vm700, %v675, 0
      %v729 = vsel %vm700, %v676, 0
      %v732 = vsel %vm700, %v677, 0
      %v735 = vsel %vm700, %v678, 0
      %v738 = vsel %vm700, %v679, 0
      %v741 = vsel %vm700, %v680, 0
      %v744 = vsel %vm700, %v681, 0
      %v747 = vsel %vm700, %v682, 0
      %749 = vmatprep.subr.bf16.mxu0 0
      %750 = vmatpush1.bf16.msra.mxu0 %v696
      %751 = vmatprep.subr.bf16.mxu0 0
      %752 = vmatpush1.bf16.msra.mxu0 %v697
      %753 = vmatprep.subr.bf16.mxu0 0
      %754 = vmatpush1.bf16.msra.mxu0 0
      %755 = vmatprep.subr.bf16.mxu0 0
      %756 = vmatpush1.bf16.msra.mxu0 0
      %757 = vmatprep.subr.bf16.mxu0 0
      %758 = vmatpush1.bf16.msra.mxu0 0
      %759 = vmatprep.subr.bf16.mxu0 0
      %760 = vmatpush1.bf16.msra.mxu0 0
      %761 = vmatprep.subr.bf16.mxu0 0
      %762 = vmatpush1.bf16.msra.mxu0 0
      %763 = vmatprep.subr.bf16.mxu0 0
      %764 = vmatpush1.bf16.msra.mxu0 0
      %765 = vmatprep.subr.bf16.mxu0 0
      %766 = vmatpush1.bf16.msra.mxu0 0
      %767 = vmatprep.subr.bf16.mxu0 0
      %768 = vmatpush1.bf16.msra.mxu0 0
      %769 = vmatprep.subr.bf16.mxu0 0
      %770 = vmatpush1.bf16.msra.mxu0 0
      %771 = vmatprep.subr.bf16.mxu0 0
      %772 = vmatpush1.bf16.msra.mxu0 0
      %773 = vmatprep.subr.bf16.mxu0 0
      %774 = vmatpush1.bf16.msra.mxu0 0
      %775 = vmatprep.subr.bf16.mxu0 0
      %776 = vmatpush1.bf16.msra.mxu0 0
      %777 = vmatprep.subr.bf16.mxu0 0
      %778 = vmatpush1.bf16.msra.mxu0 0
      %779 = vmatprep.subr.bf16.mxu0 0
      %780 = vmatpush1.bf16.msra.mxu0 0
      %781 = vmatprep.mubr.bf16.mxu0 0
      %782 = vmatmul.mubr.bf16.gmra.mrb[0].mxu0 %v702
      %v783 = vpop.f32.mrb[0].mxu0
      %v784 = vadd.f32 0.0, %v783
      %v785 = vpop.f32.mrb[0].mxu0
      %v786 = vpop.f32.mrb[0].mxu0
      %v787 = vadd.f32 0.0, %v786
      %v788 = vpop.f32.mrb[0].mxu0
      %789 = vmatprep.mubr.bf16.mxu0 0
      %790 = vmatmul.mubr.bf16.gmra.mrb[0].mxu0 %v705
      %v791 = vpop.f32.mrb[0].mxu0
      %v792 = vadd.f32 0.0, %v791
      %v793 = vpop.f32.mrb[0].mxu0
      %v794 = vpop.f32.mrb[0].mxu0
      %v795 = vadd.f32 0.0, %v794
      %v796 = vpop.f32.mrb[0].mxu0
      %797 = vmatprep.mubr.bf16.mxu0 0
      %798 = vmatmul.mubr.bf16.gmra.mrb[0].mxu0 %v708
      %v799 = vpop.f32.mrb[0].mxu0
      %v800 = vadd.f32 0.0, %v799
      %v801 = vpop.f32.mrb[0].mxu0
      %v802 = vpop.f32.mrb[0].mxu0
      %v803 = vadd.f32 0.0, %v802
      %v804 = vpop.f32.mrb[0].mxu0
      %805 = vmatprep.mubr.bf16.mxu0 0
      %806 = vmatmul.mubr.bf16.gmra.mrb[0].mxu0 %v711
      %v807 = vpop.f32.mrb[0].mxu0
      %v808 = vadd.f32 0.0, %v807
      %v809 = vpop.f32.mrb[0].mxu0
      %v810 = vpop.f32.mrb[0].mxu0
      %v811 = vadd.f32 0.0, %v810
      %v812 = vpop.f32.mrb[0].mxu0
      %813 = vmatprep.mubr.bf16.mxu0 0
      %814 = vmatmul.mubr.bf16.gmra.mrb[0].mxu0 %v714
      %v815 = vpop.f32.mrb[0].mxu0
      %v816 = vadd.f32 0.0, %v815
      %v817 = vpop.f32.mrb[0].mxu0
      %v818 = vpop.f32.mrb[0].mxu0
      %v819 = vadd.f32 0.0, %v818
      %v820 = vpop.f32.mrb[0].mxu0
      %821 = vmatprep.mubr.bf16.mxu0 0
      %822 = vmatmul.mubr.bf16.gmra.mrb[0].mxu0 %v717
      %v823 = vpop.f32.mrb[0].mxu0
      %v824 = vadd.f32 0.0, %v823
      %v825 = vpop.f32.mrb[0].mxu0
      %v826 = vpop.f32.mrb[0].mxu0
      %v827 = vadd.f32 0.0, %v826
      %v828 = vpop.f32.mrb[0].mxu0
      %829 = vmatprep.mubr.bf16.mxu0 0
      %830 = vmatmul.mubr.bf16.gmra.mrb[0].mxu0 %v720
      %v831 = vpop.f32.mrb[0].mxu0
      %v832 = vadd.f32 0.0, %v831
      %v833 = vpop.f32.mrb[0].mxu0
      %v834 = vpop.f32.mrb[0].mxu0
      %v835 = vadd.f32 0.0, %v834
      %v836 = vpop.f32.mrb[0].mxu0
      %837 = vmatprep.mubr.bf16.mxu0 0
      %838 = vmatmul.mubr.bf16.gmra.mrb[0].mxu0 %v723
      %v839 = vpop.f32.mrb[0].mxu0
      %v840 = vadd.f32 0.0, %v839
      %v841 = vpop.f32.mrb[0].mxu0
      %v842 = vpop.f32.mrb[0].mxu0
      %v843 = vadd.f32 0.0, %v842
      %v844 = vpop.f32.mrb[0].mxu0
      %845 = vmatprep.mubr.bf16.mxu0 0
      %846 = vmatmul.mubr.bf16.gmra.mrb[0].mxu0 %v726
      %v847 = vpop.f32.mrb[0].mxu0
      %v848 = vadd.f32 0.0, %v847
      %v849 = vpop.f32.mrb[0].mxu0
      %v850 = vpop.f32.mrb[0].mxu0
      %v851 = vadd.f32 0.0, %v850
      %v852 = vpop.f32.mrb[0].mxu0
      %853 = vmatprep.mubr.bf16.mxu0 0
      %854 = vmatmul.mubr.bf16.gmra.mrb[0].mxu0 %v729
      %v855 = vpop.f32.mrb[0].mxu0
      %v856 = vadd.f32 0.0, %v855
      %v857 = vpop.f32.mrb[0].mxu0
      %v858 = vpop.f32.mrb[0].mxu0
      %v859 = vadd.f32 0.0, %v858
      %v860 = vpop.f32.mrb[0].mxu0
      %861 = vmatprep.mubr.bf16.mxu0 0
      %862 = vmatmul.mubr.bf16.gmra.mrb[0].mxu0 %v732
      %v863 = vpop.f32.mrb[0].mxu0
      %v864 = vadd.f32 0.0, %v863
      %v865 = vpop.f32.mrb[0].mxu0
      %v866 = vpop.f32.mrb[0].mxu0
      %v867 = vadd.f32 0.0, %v866
      %v868 = vpop.f32.mrb[0].mxu0
      %869 = vmatprep.mubr.bf16.mxu0 0
      %870 = vmatmul.mubr.bf16.gmra.mrb[0].mxu0 %v735
      %v871 = vpop.f32.mrb[0].mxu0
      %v872 = vadd.f32 0.0, %v871
      %v873 = vpop.f32.mrb[0].mxu0
      %v874 = vpop.f32.mrb[0].mxu0
      %v875 = vadd.f32 0.0, %v874
      %v876 = vpop.f32.mrb[0].mxu0
      %877 = vmatprep.mubr.bf16.mxu0 0
      %878 = vmatmul.mubr.bf16.gmra.mrb[0].mxu0 %v738
      %v879 = vpop.f32.mrb[0].mxu0
      %v880 = vadd.f32 0.0, %v879
      %v881 = vpop.f32.mrb[0].mxu0
      %v882 = vpop.f32.mrb[0].mxu0
      %v883 = vadd.f32 0.0, %v882
      %v884 = vpop.f32.mrb[0].mxu0
      %885 = vmatprep.mubr.bf16.mxu0 0
      %886 = vmatmul.mubr.bf16.gmra.mrb[0].mxu0 %v741
      %v887 = vpop.f32.mrb[0].mxu0
      %v888 = vadd.f32 0.0, %v887
      %v889 = vpop.f32.mrb[0].mxu0
      %v890 = vpop.f32.mrb[0].mxu0
      %v891 = vadd.f32 0.0, %v890
      %v892 = vpop.f32.mrb[0].mxu0
      %893 = vmatprep.mubr.bf16.mxu0 0
      %894 = vmatmul.mubr.bf16.gmra.mrb[0].mxu0 %v744
      %v895 = vpop.f32.mrb[0].mxu0
      %v896 = vadd.f32 0.0, %v895
      %v897 = vpop.f32.mrb[0].mxu0
      %v898 = vpop.f32.mrb[0].mxu0
      %v899 = vadd.f32 0.0, %v898
      %v900 = vpop.f32.mrb[0].mxu0
      %901 = vmatprep.mubr.bf16.mxu0 0
      %902 = vmatmul.mubr.bf16.gmra.mrb[0].mxu0 %v747
      %v903 = vpop.f32.mrb[0].mxu0
      %v904 = vadd.f32 0.0, %v903
      %v905 = vpop.f32.mrb[0].mxu0
      %v906 = vpop.f32.mrb[0].mxu0
      %v907 = vadd.f32 0.0, %v906
      %v908 = vpop.f32.mrb[0].mxu0
      %909 = vdwg.mxu0
      %v914 = vunpack.c.l.b16 %v471
      %v915 = vunpack.c.l.b16 %v472
      %v916 = vunpack.c.l.b16 %v473
      %v917 = vunpack.c.l.b16 %v474
      %v918 = vpack.c.b16 %v915, %v914
      %v919 = vpack.c.b16 %v917, %v916
      %v923 = vsel %vm700, %v455, 0
      %v926 = vsel %vm700, %v456, 0
      %v929 = vsel %vm700, %v457, 0
      %v932 = vsel %vm700, %v458, 0
      %v935 = vsel %vm700, %v459, 0
      %v938 = vsel %vm700, %v460, 0
      %v941 = vsel %vm700, %v461, 0
      %v944 = vsel %vm700, %v462, 0
      %v947 = vsel %vm700, %v463, 0
      %v950 = vsel %vm700, %v464, 0
      %v953 = vsel %vm700, %v465, 0
      %v956 = vsel %vm700, %v466, 0
      %v959 = vsel %vm700, %v467, 0
      %v962 = vsel %vm700, %v468, 0
      %v965 = vsel %vm700, %v469, 0
      %v968 = vsel %vm700, %v470, 0
      %970 = vmatprep.subr.bf16.mxu0 0
      %971 = vmatpush1.bf16.msra.mxu0 %v918
      %972 = vmatprep.subr.bf16.mxu0 0
      %973 = vmatpush1.bf16.msra.mxu0 %v919
      %974 = vmatprep.subr.bf16.mxu0 0
      %975 = vmatpush1.bf16.msra.mxu0 0
      %976 = vmatprep.subr.bf16.mxu0 0
      %977 = vmatpush1.bf16.msra.mxu0 0
      %978 = vmatprep.subr.bf16.mxu0 0
      %979 = vmatpush1.bf16.msra.mxu0 0
      %980 = vmatprep.subr.bf16.mxu0 0
      %981 = vmatpush1.bf16.msra.mxu0 0
      %982 = vmatprep.subr.bf16.mxu0 0
      %983 = vmatpush1.bf16.msra.mxu0 0
      %984 = vmatprep.subr.bf16.mxu0 0
      %985 = vmatpush1.bf16.msra.mxu0 0
      %986 = vmatprep.subr.bf16.mxu0 0
      %987 = vmatpush1.bf16.msra.mxu0 0
      %988 = vmatprep.subr.bf16.mxu0 0
      %989 = vmatpush1.bf16.msra.mxu0 0
      %990 = vmatprep.subr.bf16.mxu0 0
      %991 = vmatpush1.bf16.msra.mxu0 0
      %992 = vmatprep.subr.bf16.mxu0 0
      %993 = vmatpush1.bf16.msra.mxu0 0
      %994 = vmatprep.subr.bf16.mxu0 0
      %995 = vmatpush1.bf16.msra.mxu0 0
      %996 = vmatprep.subr.bf16.mxu0 0
      %997 = vmatpush1.bf16.msra.mxu0 0
      %998 = vmatprep.subr.bf16.mxu0 0
      %999 = vmatpush1.bf16.msra.mxu0 0
      %1000 = vmatprep.subr.bf16.mxu0 0
      %1001 = vmatpush1.bf16.msra.mxu0 0
      %1002 = vmatprep.mubr.bf16.mxu0 0
      %1003 = vmatmul.mubr.bf16.gmra.mrb[0].mxu0 %v923
      %v1004 = vpop.f32.mrb[0].mxu0
      %v1005 = vadd.f32 %v784, %v1004
      %v1006 = vpop.f32.mrb[0].mxu0
      %v1007 = vpop.f32.mrb[0].mxu0
      %v1008 = vadd.f32 %v787, %v1007
      %v1009 = vpop.f32.mrb[0].mxu0
      %1010 = vmatprep.mubr.bf16.mxu0 0
      %1011 = vmatmul.mubr.bf16.gmra.mrb[0].mxu0 %v926
      %v1012 = vpop.f32.mrb[0].mxu0
      %v1013 = vadd.f32 %v792, %v1012
      %v1014 = vpop.f32.mrb[0].mxu0
      %v1015 = vpop.f32.mrb[0].mxu0
      %v1016 = vadd.f32 %v795, %v1015
      %v1017 = vpop.f32.mrb[0].mxu0
      %1018 = vmatprep.mubr.bf16.mxu0 0
      %1019 = vmatmul.mubr.bf16.gmra.mrb[0].mxu0 %v929
      %v1020 = vpop.f32.mrb[0].mxu0
      %v1021 = vadd.f32 %v800, %v1020
      %v1022 = vpop.f32.mrb[0].mxu0
      %v1023 = vpop.f32.mrb[0].mxu0
      %v1024 = vadd.f32 %v803, %v1023
      %v1025 = vpop.f32.mrb[0].mxu0
      %1026 = vmatprep.mubr.bf16.mxu0 0
      %1027 = vmatmul.mubr.bf16.gmra.mrb[0].mxu0 %v932
      %v1028 = vpop.f32.mrb[0].mxu0
      %v1029 = vadd.f32 %v808, %v1028
      %v1030 = vpop.f32.mrb[0].mxu0
      %v1031 = vpop.f32.mrb[0].mxu0
      %v1032 = vadd.f32 %v811, %v1031
      %v1033 = vpop.f32.mrb[0].mxu0
      %1034 = vmatprep.mubr.bf16.mxu0 0
      %1035 = vmatmul.mubr.bf16.gmra.mrb[0].mxu0 %v935
      %v1036 = vpop.f32.mrb[0].mxu0
      %v1037 = vadd.f32 %v816, %v1036
      %v1038 = vpop.f32.mrb[0].mxu0
      %v1039 = vpop.f32.mrb[0].mxu0
      %v1040 = vadd.f32 %v819, %v1039
      %v1041 = vpop.f32.mrb[0].mxu0
      %1042 = vmatprep.mubr.bf16.mxu0 0
      %1043 = vmatmul.mubr.bf16.gmra.mrb[0].mxu0 %v938
      %v1044 = vpop.f32.mrb[0].mxu0
      %v1045 = vadd.f32 %v824, %v1044
      %v1046 = vpop.f32.mrb[0].mxu0
      %v1047 = vpop.f32.mrb[0].mxu0
      %v1048 = vadd.f32 %v827, %v1047
      %v1049 = vpop.f32.mrb[0].mxu0
      %1050 = vmatprep.mubr.bf16.mxu0 0
      %1051 = vmatmul.mubr.bf16.gmra.mrb[0].mxu0 %v941
      %v1052 = vpop.f32.mrb[0].mxu0
      %v1053 = vadd.f32 %v832, %v1052
      %v1054 = vpop.f32.mrb[0].mxu0
      %v1055 = vpop.f32.mrb[0].mxu0
      %v1056 = vadd.f32 %v835, %v1055
      %v1057 = vpop.f32.mrb[0].mxu0
      %1058 = vmatprep.mubr.bf16.mxu0 0
      %1059 = vmatmul.mubr.bf16.gmra.mrb[0].mxu0 %v944
      %v1060 = vpop.f32.mrb[0].mxu0
      %v1061 = vadd.f32 %v840, %v1060
      %v1062 = vpop.f32.mrb[0].mxu0
      %v1063 = vpop.f32.mrb[0].mxu0
      %v1064 = vadd.f32 %v843, %v1063
      %v1065 = vpop.f32.mrb[0].mxu0
      %1066 = vmatprep.mubr.bf16.mxu0 0
      %1067 = vmatmul.mubr.bf16.gmra.mrb[0].mxu0 %v947
      %v1068 = vpop.f32.mrb[0].mxu0
      %v1069 = vadd.f32 %v848, %v1068
      %v1070 = vpop.f32.mrb[0].mxu0
      %v1071 = vpop.f32.mrb[0].mxu0
      %v1072 = vadd.f32 %v851, %v1071
      %v1073 = vpop.f32.mrb[0].mxu0
      %1074 = vmatprep.mubr.bf16.mxu0 0
      %1075 = vmatmul.mubr.bf16.gmra.mrb[0].mxu0 %v950
      %v1076 = vpop.f32.mrb[0].mxu0
      %v1077 = vadd.f32 %v856, %v1076
      %v1078 = vpop.f32.mrb[0].mxu0
      %v1079 = vpop.f32.mrb[0].mxu0
      %v1080 = vadd.f32 %v859, %v1079
      %v1081 = vpop.f32.mrb[0].mxu0
      %1082 = vmatprep.mubr.bf16.mxu0 0
      %1083 = vmatmul.mubr.bf16.gmra.mrb[0].mxu0 %v953
      %v1084 = vpop.f32.mrb[0].mxu0
      %v1085 = vadd.f32 %v864, %v1084
      %v1086 = vpop.f32.mrb[0].mxu0
      %v1087 = vpop.f32.mrb[0].mxu0
      %v1088 = vadd.f32 %v867, %v1087
      %v1089 = vpop.f32.mrb[0].mxu0
      %1090 = vmatprep.mubr.bf16.mxu0 0
      %1091 = vmatmul.mubr.bf16.gmra.mrb[0].mxu0 %v956
      %v1092 = vpop.f32.mrb[0].mxu0
      %v1093 = vadd.f32 %v872, %v1092
      %v1094 = vpop.f32.mrb[0].mxu0
      %v1095 = vpop.f32.mrb[0].mxu0
      %v1096 = vadd.f32 %v875, %v1095
      %v1097 = vpop.f32.mrb[0].mxu0
      %1098 = vmatprep.mubr.bf16.mxu0 0
      %1099 = vmatmul.mubr.bf16.gmra.mrb[0].mxu0 %v959
      %v1100 = vpop.f32.mrb[0].mxu0
      %v1101 = vadd.f32 %v880, %v1100
      %v1102 = vpop.f32.mrb[0].mxu0
      %v1103 = vpop.f32.mrb[0].mxu0
      %v1104 = vadd.f32 %v883, %v1103
      %v1105 = vpop.f32.mrb[0].mxu0
      %1106 = vmatprep.mubr.bf16.mxu0 0
      %1107 = vmatmul.mubr.bf16.gmra.mrb[0].mxu0 %v962
      %v1108 = vpop.f32.mrb[0].mxu0
      %v1109 = vadd.f32 %v888, %v1108
      %v1110 = vpop.f32.mrb[0].mxu0
      %v1111 = vpop.f32.mrb[0].mxu0
      %v1112 = vadd.f32 %v891, %v1111
      %v1113 = vpop.f32.mrb[0].mxu0
      %1114 = vmatprep.mubr.bf16.mxu0 0
      %1115 = vmatmul.mubr.bf16.gmra.mrb[0].mxu0 %v965
      %v1116 = vpop.f32.mrb[0].mxu0
      %v1117 = vadd.f32 %v896, %v1116
      %v1118 = vpop.f32.mrb[0].mxu0
      %v1119 = vpop.f32.mrb[0].mxu0
      %v1120 = vadd.f32 %v899, %v1119
      %v1121 = vpop.f32.mrb[0].mxu0
      %1122 = vmatprep.mubr.bf16.mxu0 0
      %1123 = vmatmul.mubr.bf16.gmra.mrb[0].mxu0 %v968
      %v1124 = vpop.f32.mrb[0].mxu0
      %v1125 = vadd.f32 %v904, %v1124
      %v1126 = vpop.f32.mrb[0].mxu0
      %v1127 = vpop.f32.mrb[0].mxu0
      %v1128 = vadd.f32 %v907, %v1127
      %v1129 = vpop.f32.mrb[0].mxu0
      %1130 = vdwg.mxu0
      %1131 = vset.pattern.permute.xlu0 2
      %1132 = vperm.xlu0 %1131, %v229
      %v1133 = vpop.permute.xlu0 %1132
      %1134 = vset.pattern.permute.xlu0 2
      %1135 = vperm.xlu0 %1134, %v230
      %v1136 = vpop.permute.xlu0 %1135
      %1137 = vset.pattern.permute.xlu0 2
      %1138 = vperm.xlu0 %1137, %v231
      %v1139 = vpop.permute.xlu0 %1138
      %1140 = vset.pattern.permute.xlu0 2
      %1141 = vperm.xlu0 %1140, %v232
      %v1142 = vpop.permute.xlu0 %1141
      %1143 = vset.pattern.permute.xlu0 2
      %1144 = vperm.xlu0 %1143, %v233
      %v1145 = vpop.permute.xlu0 %1144
      %1146 = vset.pattern.permute.xlu0 2
      %1147 = vperm.xlu0 %1146, %v234
      %v1148 = vpop.permute.xlu0 %1147
      %1149 = vset.pattern.permute.xlu0 2
      %1150 = vperm.xlu0 %1149, %v235
      %v1151 = vpop.permute.xlu0 %1150
      %1152 = vset.pattern.permute.xlu0 2
      %1153 = vperm.xlu0 %1152, %v236
      %v1154 = vpop.permute.xlu0 %1153
      %1155 = vset.pattern.permute.xlu0 2
      %1156 = vperm.xlu0 %1155, %v237
      %v1157 = vpop.permute.xlu0 %1156
      %1158 = vset.pattern.permute.xlu0 2
      %1159 = vperm.xlu0 %1158, %v238
      %v1160 = vpop.permute.xlu0 %1159
      %1161 = vset.pattern.permute.xlu0 2
      %1162 = vperm.xlu0 %1161, %v239
      %v1163 = vpop.permute.xlu0 %1162
      %1164 = vset.pattern.permute.xlu0 2
      %1165 = vperm.xlu0 %1164, %v240
      %v1166 = vpop.permute.xlu0 %1165
      %1167 = vset.pattern.permute.xlu0 2
      %1168 = vperm.xlu0 %1167, %v241
      %v1169 = vpop.permute.xlu0 %1168
      %1170 = vset.pattern.permute.xlu0 2
      %1171 = vperm.xlu0 %1170, %v242
      %v1172 = vpop.permute.xlu0 %1171
      %1173 = vset.pattern.permute.xlu0 2
      %1174 = vperm.xlu0 %1173, %v243
      %v1175 = vpop.permute.xlu0 %1174
      %1176 = vset.pattern.permute.xlu0 2
      %1177 = vperm.xlu0 %1176, %v244
      %v1178 = vpop.permute.xlu0 %1177
      %1179 = vset.pattern.permute.xlu0 2
      %1180 = vperm.xlu0 %1179, %v245
      %v1181 = vpop.permute.xlu0 %1180
      %1182 = vset.pattern.permute.xlu0 2
      %1183 = vperm.xlu0 %1182, %v246
      %v1184 = vpop.permute.xlu0 %1183
      %1185 = vset.pattern.permute.xlu0 2
      %1186 = vperm.xlu0 %1185, %v247
      %v1187 = vpop.permute.xlu0 %1186
      %1188 = vset.pattern.permute.xlu0 2
      %1189 = vperm.xlu0 %1188, %v248
      %v1190 = vpop.permute.xlu0 %1189
      %1191 = vset.pattern.permute.xlu0 2
      %1192 = vperm.xlu0 %1191, %v249
      %v1193 = vpop.permute.xlu0 %1192
      %1194 = vset.pattern.permute.xlu0 2
      %1195 = vperm.xlu0 %1194, %v250
      %v1196 = vpop.permute.xlu0 %1195
      %1197 = vset.pattern.permute.xlu0 2
      %1198 = vperm.xlu0 %1197, %v251
      %v1199 = vpop.permute.xlu0 %1198
      %1200 = vset.pattern.permute.xlu0 2
      %1201 = vperm.xlu0 %1200, %v252
      %v1202 = vpop.permute.xlu0 %1201
      %1203 = vset.pattern.permute.xlu0 2
      %1204 = vperm.xlu0 %1203, %v253
      %v1205 = vpop.permute.xlu0 %1204
      %1206 = vset.pattern.permute.xlu0 2
      %1207 = vperm.xlu0 %1206, %v254
      %v1208 = vpop.permute.xlu0 %1207
      %1209 = vset.pattern.permute.xlu0 2
      %1210 = vperm.xlu0 %1209, %v255
      %v1211 = vpop.permute.xlu0 %1210
      %1212 = vset.pattern.permute.xlu0 2
      %1213 = vperm.xlu0 %1212, %v256
      %v1214 = vpop.permute.xlu0 %1213
      %1215 = vset.pattern.permute.xlu0 2
      %1216 = vperm.xlu0 %1215, %v257
      %v1217 = vpop.permute.xlu0 %1216
      %1218 = vset.pattern.permute.xlu0 2
      %1219 = vperm.xlu0 %1218, %v258
      %v1220 = vpop.permute.xlu0 %1219
      %1221 = vset.pattern.permute.xlu0 2
      %1222 = vperm.xlu0 %1221, %v259
      %v1223 = vpop.permute.xlu0 %1222
      %1224 = vset.pattern.permute.xlu0 2
      %1225 = vperm.xlu0 %1224, %v260
      %v1226 = vpop.permute.xlu0 %1225
      %vm1227 = vcmp.eq.s32.totalorder %v1133, %v262
      %vm1228 = vcmp.eq.s32.totalorder %v1136, %v262
      %vm1229 = vcmp.eq.s32.totalorder %v1139, %v262
      %vm1230 = vcmp.eq.s32.totalorder %v1142, %v262
      %vm1231 = vcmp.eq.s32.totalorder %v1145, %v262
      %vm1232 = vcmp.eq.s32.totalorder %v1148, %v262
      %vm1233 = vcmp.eq.s32.totalorder %v1151, %v262
      %vm1234 = vcmp.eq.s32.totalorder %v1154, %v262
      %vm1235 = vcmp.eq.s32.totalorder %v1157, %v262
      %vm1236 = vcmp.eq.s32.totalorder %v1160, %v262
      %vm1237 = vcmp.eq.s32.totalorder %v1163, %v262
      %vm1238 = vcmp.eq.s32.totalorder %v1166, %v262
      %vm1239 = vcmp.eq.s32.totalorder %v1169, %v262
      %vm1240 = vcmp.eq.s32.totalorder %v1172, %v262
      %vm1241 = vcmp.eq.s32.totalorder %v1175, %v262
      %vm1242 = vcmp.eq.s32.totalorder %v1178, %v262
      %vm1243 = vcmp.eq.s32.totalorder %v1181, %v262
      %vm1244 = vcmp.eq.s32.totalorder %v1184, %v262
      %vm1245 = vcmp.eq.s32.totalorder %v1187, %v262
      %vm1246 = vcmp.eq.s32.totalorder %v1190, %v262
      %vm1247 = vcmp.eq.s32.totalorder %v1193, %v262
      %vm1248 = vcmp.eq.s32.totalorder %v1196, %v262
      %vm1249 = vcmp.eq.s32.totalorder %v1199, %v262
      %vm1250 = vcmp.eq.s32.totalorder %v1202, %v262
      %vm1251 = vcmp.eq.s32.totalorder %v1205, %v262
      %vm1252 = vcmp.eq.s32.totalorder %v1208, %v262
      %vm1253 = vcmp.eq.s32.totalorder %v1211, %v262
      %vm1254 = vcmp.eq.s32.totalorder %v1214, %v262
      %vm1255 = vcmp.eq.s32.totalorder %v1217, %v262
      %vm1256 = vcmp.eq.s32.totalorder %v1220, %v262
      %vm1257 = vcmp.eq.s32.totalorder %v1223, %v262
      %vm1258 = vcmp.eq.s32.totalorder %v1226, %v262
      %v1259 = vsel %vm1227, 1, 0
      %v1260 = vsel %vm1228, 1, 0
      %v1261 = vsel %vm1229, 1, 0
      %v1262 = vsel %vm1230, 1, 0
      %v1263 = vsel %vm1231, 1, 0
      %v1264 = vsel %vm1232, 1, 0
      %v1265 = vsel %vm1233, 1, 0
      %v1266 = vsel %vm1234, 1, 0
      %v1267 = vsel %vm1235, 1, 0
      %v1268 = vsel %vm1236, 1, 0
      %v1269 = vsel %vm1237, 1, 0
      %v1270 = vsel %vm1238, 1, 0
      %v1271 = vsel %vm1239, 1, 0
      %v1272 = vsel %vm1240, 1, 0
      %v1273 = vsel %vm1241, 1, 0
      %v1274 = vsel %vm1242, 1, 0
      %v1275 = vsel %vm1243, 1, 0
      %v1276 = vsel %vm1244, 1, 0
      %v1277 = vsel %vm1245, 1, 0
      %v1278 = vsel %vm1246, 1, 0
      %v1279 = vsel %vm1247, 1, 0
      %v1280 = vsel %vm1248, 1, 0
      %v1281 = vsel %vm1249, 1, 0
      %v1282 = vsel %vm1250, 1, 0
      %v1283 = vsel %vm1251, 1, 0
      %v1284 = vsel %vm1252, 1, 0
      %v1285 = vsel %vm1253, 1, 0
      %v1286 = vsel %vm1254, 1, 0
      %v1287 = vsel %vm1255, 1, 0
      %v1288 = vsel %vm1256, 1, 0
      %v1289 = vsel %vm1257, 1, 0
      %v1290 = vsel %vm1258, 1, 0
      %v1291 = vcvt.s32.f32 %v1259
      %v1292 = vcvt.s32.f32 %v1260
      %v1293 = vcvt.s32.f32 %v1261
      %v1294 = vcvt.s32.f32 %v1262
      %v1295 = vcvt.s32.f32 %v1263
      %v1296 = vcvt.s32.f32 %v1264
      %v1297 = vcvt.s32.f32 %v1265
      %v1298 = vcvt.s32.f32 %v1266
      %v1299 = vcvt.s32.f32 %v1267
      %v1300 = vcvt.s32.f32 %v1268
      %v1301 = vcvt.s32.f32 %v1269
      %v1302 = vcvt.s32.f32 %v1270
      %v1303 = vcvt.s32.f32 %v1271
      %v1304 = vcvt.s32.f32 %v1272
      %v1305 = vcvt.s32.f32 %v1273
      %v1306 = vcvt.s32.f32 %v1274
      %v1307 = vcvt.s32.f32 %v1275
      %v1308 = vcvt.s32.f32 %v1276
      %v1309 = vcvt.s32.f32 %v1277
      %v1310 = vcvt.s32.f32 %v1278
      %v1311 = vcvt.s32.f32 %v1279
      %v1312 = vcvt.s32.f32 %v1280
      %v1313 = vcvt.s32.f32 %v1281
      %v1314 = vcvt.s32.f32 %v1282
      %v1315 = vcvt.s32.f32 %v1283
      %v1316 = vcvt.s32.f32 %v1284
      %v1317 = vcvt.s32.f32 %v1285
      %v1318 = vcvt.s32.f32 %v1286
      %v1319 = vcvt.s32.f32 %v1287
      %v1320 = vcvt.s32.f32 %v1288
      %v1321 = vcvt.s32.f32 %v1289
      %v1322 = vcvt.s32.f32 %v1290
      %v1323 = vpack.c.bf16 %v1292, %v1291
      %v1324 = vpack.c.bf16 %v1294, %v1293
      %v1325 = vpack.c.bf16 %v1296, %v1295
      %v1326 = vpack.c.bf16 %v1298, %v1297
      %v1327 = vpack.c.bf16 %v1300, %v1299
      %v1328 = vpack.c.bf16 %v1302, %v1301
      %v1329 = vpack.c.bf16 %v1304, %v1303
      %v1330 = vpack.c.bf16 %v1306, %v1305
      %v1331 = vpack.c.bf16 %v1308, %v1307
      %v1332 = vpack.c.bf16 %v1310, %v1309
      %v1333 = vpack.c.bf16 %v1312, %v1311
      %v1334 = vpack.c.bf16 %v1314, %v1313
      %v1335 = vpack.c.bf16 %v1316, %v1315
      %v1336 = vpack.c.bf16 %v1318, %v1317
      %v1337 = vpack.c.bf16 %v1320, %v1319
      %v1338 = vpack.c.bf16 %v1322, %v1321
      %s1339 = scalar_lea.vmem %s1, 32
      %v1340 = vld [vmem:[%s1339] sm:$0xf]
      %v1341 = vld [vmem:[%s1339 + $0x4] sm:$0xf]
      %v1342 = vld [vmem:[%s1339 + $0x8] sm:$0xf]
      %v1343 = vld [vmem:[%s1339 + $0xc] sm:$0xf]
      %v1348 = vunpack.c.l.b16 %v1340
      %v1349 = vunpack.c.l.b16 %v1341
      %v1350 = vunpack.c.l.b16 %v1342
      %v1351 = vunpack.c.l.b16 %v1343
      %v1352 = vpack.c.b16 %v1349, %v1348
      %v1353 = vpack.c.b16 %v1351, %v1350
      %v1357 = vsel %vm700, %v1323, 0
      %v1360 = vsel %vm700, %v1324, 0
      %v1363 = vsel %vm700, %v1325, 0
      %v1366 = vsel %vm700, %v1326, 0
      %v1369 = vsel %vm700, %v1327, 0
      %v1372 = vsel %vm700, %v1328, 0
      %v1375 = vsel %vm700, %v1329, 0
      %v1378 = vsel %vm700, %v1330, 0
      %v1381 = vsel %vm700, %v1331, 0
      %v1384 = vsel %vm700, %v1332, 0
      %v1387 = vsel %vm700, %v1333, 0
      %v1390 = vsel %vm700, %v1334, 0
      %v1393 = vsel %vm700, %v1335, 0
      %v1396 = vsel %vm700, %v1336, 0
      %v1399 = vsel %vm700, %v1337, 0
      %v1402 = vsel %vm700, %v1338, 0
      %1404 = vmatprep.subr.bf16.mxu0 0
      %1405 = vmatpush1.bf16.msra.mxu0 %v1352
      %1406 = vmatprep.subr.bf16.mxu0 0
      %1407 = vmatpush1.bf16.msra.mxu0 %v1353
      %1408 = vmatprep.subr.bf16.mxu0 0
      %1409 = vmatpush1.bf16.msra.mxu0 0
      %1410 = vmatprep.subr.bf16.mxu0 0
      %1411 = vmatpush1.bf16.msra.mxu0 0
      %1412 = vmatprep.subr.bf16.mxu0 0
      %1413 = vmatpush1.bf16.msra.mxu0 0
      %1414 = vmatprep.subr.bf16.mxu0 0
      %1415 = vmatpush1.bf16.msra.mxu0 0
      %1416 = vmatprep.subr.bf16.mxu0 0
      %1417 = vmatpush1.bf16.msra.mxu0 0
      %1418 = vmatprep.subr.bf16.mxu0 0
      %1419 = vmatpush1.bf16.msra.mxu0 0
      %1420 = vmatprep.subr.bf16.mxu0 0
      %1421 = vmatpush1.bf16.msra.mxu0 0
      %1422 = vmatprep.subr.bf16.mxu0 0
      %1423 = vmatpush1.bf16.msra.mxu0 0
      %1424 = vmatprep.subr.bf16.mxu0 0
      %1425 = vmatpush1.bf16.msra.mxu0 0
      %1426 = vmatprep.subr.bf16.mxu0 0
      %1427 = vmatpush1.bf16.msra.mxu0 0
      %1428 = vmatprep.subr.bf16.mxu0 0
      %1429 = vmatpush1.bf16.msra.mxu0 0
      %1430 = vmatprep.subr.bf16.mxu0 0
      %1431 = vmatpush1.bf16.msra.mxu0 0
      %1432 = vmatprep.subr.bf16.mxu0 0
      %1433 = vmatpush1.bf16.msra.mxu0 0
      %1434 = vmatprep.subr.bf16.mxu0 0
      %1435 = vmatpush1.bf16.msra.mxu0 0
      %1436 = vmatprep.mubr.bf16.mxu0 0
      %1437 = vmatmul.mubr.bf16.gmra.mrb[0].mxu0 %v1357
      %v1438 = vpop.f32.mrb[0].mxu0
      %v1439 = vadd.f32 0.0, %v1438
      %v1440 = vpop.f32.mrb[0].mxu0
      %v1441 = vpop.f32.mrb[0].mxu0
      %v1442 = vadd.f32 0.0, %v1441
      %v1443 = vpop.f32.mrb[0].mxu0
      %1444 = vmatprep.mubr.bf16.mxu0 0
      %1445 = vmatmul.mubr.bf16.gmra.mrb[0].mxu0 %v1360
      %v1446 = vpop.f32.mrb[0].mxu0
      %v1447 = vadd.f32 0.0, %v1446
      %v1448 = vpop.f32.mrb[0].mxu0
      %v1449 = vpop.f32.mrb[0].mxu0
      %v1450 = vadd.f32 0.0, %v1449
      %v1451 = vpop.f32.mrb[0].mxu0
      %1452 = vmatprep.mubr.bf16.mxu0 0
      %1453 = vmatmul.mubr.bf16.gmra.mrb[0].mxu0 %v1363
      %v1454 = vpop.f32.mrb[0].mxu0
      %v1455 = vadd.f32 0.0, %v1454
      %v1456 = vpop.f32.mrb[0].mxu0
      %v1457 = vpop.f32.mrb[0].mxu0
      %v1458 = vadd.f32 0.0, %v1457
      %v1459 = vpop.f32.mrb[0].mxu0
      %1460 = vmatprep.mubr.bf16.mxu0 0
      %1461 = vmatmul.mubr.bf16.gmra.mrb[0].mxu0 %v1366
      %v1462 = vpop.f32.mrb[0].mxu0
      %v1463 = vadd.f32 0.0, %v1462
      %v1464 = vpop.f32.mrb[0].mxu0
      %v1465 = vpop.f32.mrb[0].mxu0
      %v1466 = vadd.f32 0.0, %v1465
      %v1467 = vpop.f32.mrb[0].mxu0
      %1468 = vmatprep.mubr.bf16.mxu0 0
      %1469 = vmatmul.mubr.bf16.gmra.mrb[0].mxu0 %v1369
      %v1470 = vpop.f32.mrb[0].mxu0
      %v1471 = vadd.f32 0.0, %v1470
      %v1472 = vpop.f32.mrb[0].mxu0
      %v1473 = vpop.f32.mrb[0].mxu0
      %v1474 = vadd.f32 0.0, %v1473
      %v1475 = vpop.f32.mrb[0].mxu0
      %1476 = vmatprep.mubr.bf16.mxu0 0
      %1477 = vmatmul.mubr.bf16.gmra.mrb[0].mxu0 %v1372
      %v1478 = vpop.f32.mrb[0].mxu0
      %v1479 = vadd.f32 0.0, %v1478
      %v1480 = vpop.f32.mrb[0].mxu0
      %v1481 = vpop.f32.mrb[0].mxu0
      %v1482 = vadd.f32 0.0, %v1481
      %v1483 = vpop.f32.mrb[0].mxu0
      %1484 = vmatprep.mubr.bf16.mxu0 0
      %1485 = vmatmul.mubr.bf16.gmra.mrb[0].mxu0 %v1375
      %v1486 = vpop.f32.mrb[0].mxu0
      %v1487 = vadd.f32 0.0, %v1486
      %v1488 = vpop.f32.mrb[0].mxu0
      %v1489 = vpop.f32.mrb[0].mxu0
      %v1490 = vadd.f32 0.0, %v1489
      %v1491 = vpop.f32.mrb[0].mxu0
      %1492 = vmatprep.mubr.bf16.mxu0 0
      %1493 = vmatmul.mubr.bf16.gmra.mrb[0].mxu0 %v1378
      %v1494 = vpop.f32.mrb[0].mxu0
      %v1495 = vadd.f32 0.0, %v1494
      %v1496 = vpop.f32.mrb[0].mxu0
      %v1497 = vpop.f32.mrb[0].mxu0
      %v1498 = vadd.f32 0.0, %v1497
      %v1499 = vpop.f32.mrb[0].mxu0
      %1500 = vmatprep.mubr.bf16.mxu0 0
      %1501 = vmatmul.mubr.bf16.gmra.mrb[0].mxu0 %v1381
      %v1502 = vpop.f32.mrb[0].mxu0
      %v1503 = vadd.f32 0.0, %v1502
      %v1504 = vpop.f32.mrb[0].mxu0
      %v1505 = vpop.f32.mrb[0].mxu0
      %v1506 = vadd.f32 0.0, %v1505
      %v1507 = vpop.f32.mrb[0].mxu0
      %1508 = vmatprep.mubr.bf16.mxu0 0
      %1509 = vmatmul.mubr.bf16.gmra.mrb[0].mxu0 %v1384
      %v1510 = vpop.f32.mrb[0].mxu0
      %v1511 = vadd.f32 0.0, %v1510
      %v1512 = vpop.f32.mrb[0].mxu0
      %v1513 = vpop.f32.mrb[0].mxu0
      %v1514 = vadd.f32 0.0, %v1513
      %v1515 = vpop.f32.mrb[0].mxu0
      %1516 = vmatprep.mubr.bf16.mxu0 0
      %1517 = vmatmul.mubr.bf16.gmra.mrb[0].mxu0 %v1387
      %v1518 = vpop.f32.mrb[0].mxu0
      %v1519 = vadd.f32 0.0, %v1518
      %v1520 = vpop.f32.mrb[0].mxu0
      %v1521 = vpop.f32.mrb[0].mxu0
      %v1522 = vadd.f32 0.0, %v1521
      %v1523 = vpop.f32.mrb[0].mxu0
      %1524 = vmatprep.mubr.bf16.mxu0 0
      %1525 = vmatmul.mubr.bf16.gmra.mrb[0].mxu0 %v1390
      %v1526 = vpop.f32.mrb[0].mxu0
      %v1527 = vadd.f32 0.0, %v1526
      %v1528 = vpop.f32.mrb[0].mxu0
      %v1529 = vpop.f32.mrb[0].mxu0
      %v1530 = vadd.f32 0.0, %v1529
      %v1531 = vpop.f32.mrb[0].mxu0
      %1532 = vmatprep.mubr.bf16.mxu0 0
      %1533 = vmatmul.mubr.bf16.gmra.mrb[0].mxu0 %v1393
      %v1534 = vpop.f32.mrb[0].mxu0
      %v1535 = vadd.f32 0.0, %v1534
      %v1536 = vpop.f32.mrb[0].mxu0
      %v1537 = vpop.f32.mrb[0].mxu0
      %v1538 = vadd.f32 0.0, %v1537
      %v1539 = vpop.f32.mrb[0].mxu0
      %1540 = vmatprep.mubr.bf16.mxu0 0
      %1541 = vmatmul.mubr.bf16.gmra.mrb[0].mxu0 %v1396
      %v1542 = vpop.f32.mrb[0].mxu0
      %v1543 = vadd.f32 0.0, %v1542
      %v1544 = vpop.f32.mrb[0].mxu0
      %v1545 = vpop.f32.mrb[0].mxu0
      %v1546 = vadd.f32 0.0, %v1545
      %v1547 = vpop.f32.mrb[0].mxu0
      %1548 = vmatprep.mubr.bf16.mxu0 0
      %1549 = vmatmul.mubr.bf16.gmra.mrb[0].mxu0 %v1399
      %v1550 = vpop.f32.mrb[0].mxu0
      %v1551 = vadd.f32 0.0, %v1550
      %v1552 = vpop.f32.mrb[0].mxu0
      %v1553 = vpop.f32.mrb[0].mxu0
      %v1554 = vadd.f32 0.0, %v1553
      %v1555 = vpop.f32.mrb[0].mxu0
      %1556 = vmatprep.mubr.bf16.mxu0 0
      %1557 = vmatmul.mubr.bf16.gmra.mrb[0].mxu0 %v1402
      %v1558 = vpop.f32.mrb[0].mxu0
      %v1559 = vadd.f32 0.0, %v1558
      %v1560 = vpop.f32.mrb[0].mxu0
      %v1561 = vpop.f32.mrb[0].mxu0
      %v1562 = vadd.f32 0.0, %v1561
      %v1563 = vpop.f32.mrb[0].mxu0
      %1564 = vdwg.mxu0
      %v1565 = vadd.f32 %v1005, %v1439
      %v1566 = vadd.f32 %v1008, %v1442
      %v1567 = vadd.f32 %v1013, %v1447
      %v1568 = vadd.f32 %v1016, %v1450
      %v1569 = vadd.f32 %v1021, %v1455
      %v1570 = vadd.f32 %v1024, %v1458
      %v1571 = vadd.f32 %v1029, %v1463
      %v1572 = vadd.f32 %v1032, %v1466
      %v1573 = vadd.f32 %v1037, %v1471
      %v1574 = vadd.f32 %v1040, %v1474
      %v1575 = vadd.f32 %v1045, %v1479
      %v1576 = vadd.f32 %v1048, %v1482
      %v1577 = vadd.f32 %v1053, %v1487
      %v1578 = vadd.f32 %v1056, %v1490
      %v1579 = vadd.f32 %v1061, %v1495
      %v1580 = vadd.f32 %v1064, %v1498
      %v1581 = vadd.f32 %v1069, %v1503
      %v1582 = vadd.f32 %v1072, %v1506
      %v1583 = vadd.f32 %v1077, %v1511
      %v1584 = vadd.f32 %v1080, %v1514
      %v1585 = vadd.f32 %v1085, %v1519
      %v1586 = vadd.f32 %v1088, %v1522
      %v1587 = vadd.f32 %v1093, %v1527
      %v1588 = vadd.f32 %v1096, %v1530
      %v1589 = vadd.f32 %v1101, %v1535
      %v1590 = vadd.f32 %v1104, %v1538
      %v1591 = vadd.f32 %v1109, %v1543
      %v1592 = vadd.f32 %v1112, %v1546
      %v1593 = vadd.f32 %v1117, %v1551
      %v1594 = vadd.f32 %v1120, %v1554
      %v1595 = vadd.f32 %v1125, %v1559
      %v1596 = vadd.f32 %v1128, %v1562
      %1597 = vset.pattern.permute.xlu0 3
      %1598 = vperm.xlu0 %1597, %v229
      %v1599 = vpop.permute.xlu0 %1598
      %1600 = vset.pattern.permute.xlu0 3
      %1601 = vperm.xlu0 %1600, %v230
      %v1602 = vpop.permute.xlu0 %1601
      %1603 = vset.pattern.permute.xlu0 3
      %1604 = vperm.xlu0 %1603, %v231
      %v1605 = vpop.permute.xlu0 %1604
      %1606 = vset.pattern.permute.xlu0 3
      %1607 = vperm.xlu0 %1606, %v232
      %v1608 = vpop.permute.xlu0 %1607
      %1609 = vset.pattern.permute.xlu0 3
      %1610 = vperm.xlu0 %1609, %v233
      %v1611 = vpop.permute.xlu0 %1610
      %1612 = vset.pattern.permute.xlu0 3
      %1613 = vperm.xlu0 %1612, %v234
      %v1614 = vpop.permute.xlu0 %1613
      %1615 = vset.pattern.permute.xlu0 3
      %1616 = vperm.xlu0 %1615, %v235
      %v1617 = vpop.permute.xlu0 %1616
      %1618 = vset.pattern.permute.xlu0 3
      %1619 = vperm.xlu0 %1618, %v236
      %v1620 = vpop.permute.xlu0 %1619
      %1621 = vset.pattern.permute.xlu0 3
      %1622 = vperm.xlu0 %1621, %v237
      %v1623 = vpop.permute.xlu0 %1622
      %1624 = vset.pattern.permute.xlu0 3
      %1625 = vperm.xlu0 %1624, %v238
      %v1626 = vpop.permute.xlu0 %1625
      %1627 = vset.pattern.permute.xlu0 3
      %1628 = vperm.xlu0 %1627, %v239
      %v1629 = vpop.permute.xlu0 %1628
      %1630 = vset.pattern.permute.xlu0 3
      %1631 = vperm.xlu0 %1630, %v240
      %v1632 = vpop.permute.xlu0 %1631
      %1633 = vset.pattern.permute.xlu0 3
      %1634 = vperm.xlu0 %1633, %v241
      %v1635 = vpop.permute.xlu0 %1634
      %1636 = vset.pattern.permute.xlu0 3
      %1637 = vperm.xlu0 %1636, %v242
      %v1638 = vpop.permute.xlu0 %1637
      %1639 = vset.pattern.permute.xlu0 3
      %1640 = vperm.xlu0 %1639, %v243
      %v1641 = vpop.permute.xlu0 %1640
      %1642 = vset.pattern.permute.xlu0 3
      %1643 = vperm.xlu0 %1642, %v244
      %v1644 = vpop.permute.xlu0 %1643
      %1645 = vset.pattern.permute.xlu0 3
      %1646 = vperm.xlu0 %1645, %v245
      %v1647 = vpop.permute.xlu0 %1646
      %1648 = vset.pattern.permute.xlu0 3
      %1649 = vperm.xlu0 %1648, %v246
      %v1650 = vpop.permute.xlu0 %1649
      %1651 = vset.pattern.permute.xlu0 3
      %1652 = vperm.xlu0 %1651, %v247
      %v1653 = vpop.permute.xlu0 %1652
      %1654 = vset.pattern.permute.xlu0 3
      %1655 = vperm.xlu0 %1654, %v248
      %v1656 = vpop.permute.xlu0 %1655
      %1657 = vset.pattern.permute.xlu0 3
      %1658 = vperm.xlu0 %1657, %v249
      %v1659 = vpop.permute.xlu0 %1658
      %1660 = vset.pattern.permute.xlu0 3
      %1661 = vperm.xlu0 %1660, %v250
      %v1662 = vpop.permute.xlu0 %1661
      %1663 = vset.pattern.permute.xlu0 3
      %1664 = vperm.xlu0 %1663, %v251
      %v1665 = vpop.permute.xlu0 %1664
      %1666 = vset.pattern.permute.xlu0 3
      %1667 = vperm.xlu0 %1666, %v252
      %v1668 = vpop.permute.xlu0 %1667
      %1669 = vset.pattern.permute.xlu0 3
      %1670 = vperm.xlu0 %1669, %v253
      %v1671 = vpop.permute.xlu0 %1670
      %1672 = vset.pattern.permute.xlu0 3
      %1673 = vperm.xlu0 %1672, %v254
      %v1674 = vpop.permute.xlu0 %1673
      %1675 = vset.pattern.permute.xlu0 3
      %1676 = vperm.xlu0 %1675, %v255
      %v1677 = vpop.permute.xlu0 %1676
      %1678 = vset.pattern.permute.xlu0 3
      %1679 = vperm.xlu0 %1678, %v256
      %v1680 = vpop.permute.xlu0 %1679
      %1681 = vset.pattern.permute.xlu0 3
      %1682 = vperm.xlu0 %1681, %v257
      %v1683 = vpop.permute.xlu0 %1682
      %1684 = vset.pattern.permute.xlu0 3
      %1685 = vperm.xlu0 %1684, %v258
      %v1686 = vpop.permute.xlu0 %1685
      %1687 = vset.pattern.permute.xlu0 3
      %1688 = vperm.xlu0 %1687, %v259
      %v1689 = vpop.permute.xlu0 %1688
      %1690 = vset.pattern.permute.xlu0 3
      %1691 = vperm.xlu0 %1690, %v260
      %v1692 = vpop.permute.xlu0 %1691
      %vm1693 = vcmp.eq.s32.totalorder %v1599, %v262
      %vm1694 = vcmp.eq.s32.totalorder %v1602, %v262
      %vm1695 = vcmp.eq.s32.totalorder %v1605, %v262
      %vm1696 = vcmp.eq.s32.totalorder %v1608, %v262
      %vm1697 = vcmp.eq.s32.totalorder %v1611, %v262
      %vm1698 = vcmp.eq.s32.totalorder %v1614, %v262
      %vm1699 = vcmp.eq.s32.totalorder %v1617, %v262
      %vm1700 = vcmp.eq.s32.totalorder %v1620, %v262
      %vm1701 = vcmp.eq.s32.totalorder %v1623, %v262
      %vm1702 = vcmp.eq.s32.totalorder %v1626, %v262
      %vm1703 = vcmp.eq.s32.totalorder %v1629, %v262
      %vm1704 = vcmp.eq.s32.totalorder %v1632, %v262
      %vm1705 = vcmp.eq.s32.totalorder %v1635, %v262
      %vm1706 = vcmp.eq.s32.totalorder %v1638, %v262
      %vm1707 = vcmp.eq.s32.totalorder %v1641, %v262
      %vm1708 = vcmp.eq.s32.totalorder %v1644, %v262
      %vm1709 = vcmp.eq.s32.totalorder %v1647, %v262
      %vm1710 = vcmp.eq.s32.totalorder %v1650, %v262
      %vm1711 = vcmp.eq.s32.totalorder %v1653, %v262
      %vm1712 = vcmp.eq.s32.totalorder %v1656, %v262
      %vm1713 = vcmp.eq.s32.totalorder %v1659, %v262
      %vm1714 = vcmp.eq.s32.totalorder %v1662, %v262
      %vm1715 = vcmp.eq.s32.totalorder %v1665, %v262
      %vm1716 = vcmp.eq.s32.totalorder %v1668, %v262
      %vm1717 = vcmp.eq.s32.totalorder %v1671, %v262
      %vm1718 = vcmp.eq.s32.totalorder %v1674, %v262
      %vm1719 = vcmp.eq.s32.totalorder %v1677, %v262
      %vm1720 = vcmp.eq.s32.totalorder %v1680, %v262
      %vm1721 = vcmp.eq.s32.totalorder %v1683, %v262
      %vm1722 = vcmp.eq.s32.totalorder %v1686, %v262
      %vm1723 = vcmp.eq.s32.totalorder %v1689, %v262
      %vm1724 = vcmp.eq.s32.totalorder %v1692, %v262
      %v1725 = vsel %vm1693, 1, 0
      %v1726 = vsel %vm1694, 1, 0
      %v1727 = vsel %vm1695, 1, 0
      %v1728 = vsel %vm1696, 1, 0
      %v1729 = vsel %vm1697, 1, 0
      %v1730 = vsel %vm1698, 1, 0
      %v1731 = vsel %vm1699, 1, 0
      %v1732 = vsel %vm1700, 1, 0
      %v1733 = vsel %vm1701, 1, 0
      %v1734 = vsel %vm1702, 1, 0
      %v1735 = vsel %vm1703, 1, 0
      %v1736 = vsel %vm1704, 1, 0
      %v1737 = vsel %vm1705, 1, 0
      %v1738 = vsel %vm1706, 1, 0
      %v1739 = vsel %vm1707, 1, 0
      %v1740 = vsel %vm1708, 1, 0
      %v1741 = vsel %vm1709, 1, 0
      %v1742 = vsel %vm1710, 1, 0
      %v1743 = vsel %vm1711, 1, 0
      %v1744 = vsel %vm1712, 1, 0
      %v1745 = vsel %vm1713, 1, 0
      %v1746 = vsel %vm1714, 1, 0
      %v1747 = vsel %vm1715, 1, 0
      %v1748 = vsel %vm1716, 1, 0
      %v1749 = vsel %vm1717, 1, 0
      %v1750 = vsel %vm1718, 1, 0
      %v1751 = vsel %vm1719, 1, 0
      %v1752 = vsel %vm1720, 1, 0
      %v1753 = vsel %vm1721, 1, 0
      %v1754 = vsel %vm1722, 1, 0
      %v1755 = vsel %vm1723, 1, 0
      %v1756 = vsel %vm1724, 1, 0
      %v1757 = vcvt.s32.f32 %v1725
      %v1758 = vcvt.s32.f32 %v1726
      %v1759 = vcvt.s32.f32 %v1727
      %v1760 = vcvt.s32.f32 %v1728
      %v1761 = vcvt.s32.f32 %v1729
      %v1762 = vcvt.s32.f32 %v1730
      %v1763 = vcvt.s32.f32 %v1731
      %v1764 = vcvt.s32.f32 %v1732
      %v1765 = vcvt.s32.f32 %v1733
      %v1766 = vcvt.s32.f32 %v1734
      %v1767 = vcvt.s32.f32 %v1735
      %v1768 = vcvt.s32.f32 %v1736
      %v1769 = vcvt.s32.f32 %v1737
      %v1770 = vcvt.s32.f32 %v1738
      %v1771 = vcvt.s32.f32 %v1739
      %v1772 = vcvt.s32.f32 %v1740
      %v1773 = vcvt.s32.f32 %v1741
      %v1774 = vcvt.s32.f32 %v1742
      %v1775 = vcvt.s32.f32 %v1743
      %v1776 = vcvt.s32.f32 %v1744
      %v1777 = vcvt.s32.f32 %v1745
      %v1778 = vcvt.s32.f32 %v1746
      %v1779 = vcvt.s32.f32 %v1747
      %v1780 = vcvt.s32.f32 %v1748
      %v1781 = vcvt.s32.f32 %v1749
      %v1782 = vcvt.s32.f32 %v1750
      %v1783 = vcvt.s32.f32 %v1751
      %v1784 = vcvt.s32.f32 %v1752
      %v1785 = vcvt.s32.f32 %v1753
      %v1786 = vcvt.s32.f32 %v1754
      %v1787 = vcvt.s32.f32 %v1755
      %v1788 = vcvt.s32.f32 %v1756
      %v1789 = vpack.c.bf16 %v1758, %v1757
      %v1790 = vpack.c.bf16 %v1760, %v1759
      %v1791 = vpack.c.bf16 %v1762, %v1761
      %v1792 = vpack.c.bf16 %v1764, %v1763
      %v1793 = vpack.c.bf16 %v1766, %v1765
      %v1794 = vpack.c.bf16 %v1768, %v1767
      %v1795 = vpack.c.bf16 %v1770, %v1769
      %v1796 = vpack.c.bf16 %v1772, %v1771
      %v1797 = vpack.c.bf16 %v1774, %v1773
      %v1798 = vpack.c.bf16 %v1776, %v1775
      %v1799 = vpack.c.bf16 %v1778, %v1777
      %v1800 = vpack.c.bf16 %v1780, %v1779
      %v1801 = vpack.c.bf16 %v1782, %v1781
      %v1802 = vpack.c.bf16 %v1784, %v1783
      %v1803 = vpack.c.bf16 %v1786, %v1785
      %v1804 = vpack.c.bf16 %v1788, %v1787
      %s1805 = scalar_lea.vmem %s1, 48
      %v1806 = vld [vmem:[%s1805] sm:$0xf]
      %v1807 = vld [vmem:[%s1805 + $0x4] sm:$0xf]
      %v1808 = vld [vmem:[%s1805 + $0x8] sm:$0xf]
      %v1809 = vld [vmem:[%s1805 + $0xc] sm:$0xf]
      %v1814 = vunpack.c.l.b16 %v1806
      %v1815 = vunpack.c.l.b16 %v1807
      %v1816 = vunpack.c.l.b16 %v1808
      %v1817 = vunpack.c.l.b16 %v1809
      %v1818 = vpack.c.b16 %v1815, %v1814
      %v1819 = vpack.c.b16 %v1817, %v1816
      %v1823 = vsel %vm700, %v1789, 0
      %v1826 = vsel %vm700, %v1790, 0
      %v1829 = vsel %vm700, %v1791, 0
      %v1832 = vsel %vm700, %v1792, 0
      %v1835 = vsel %vm700, %v1793, 0
      %v1838 = vsel %vm700, %v1794, 0
      %v1841 = vsel %vm700, %v1795, 0
      %v1844 = vsel %vm700, %v1796, 0
      %v1847 = vsel %vm700, %v1797, 0
      %v1850 = vsel %vm700, %v1798, 0
      %v1853 = vsel %vm700, %v1799, 0
      %v1856 = vsel %vm700, %v1800, 0
      %v1859 = vsel %vm700, %v1801, 0
      %v1862 = vsel %vm700, %v1802, 0
      %v1865 = vsel %vm700, %v1803, 0
      %v1868 = vsel %vm700, %v1804, 0
      %1870 = vmatprep.subr.bf16.mxu0 0
      %1871 = vmatpush1.bf16.msra.mxu0 %v1818
      %1872 = vmatprep.subr.bf16.mxu0 0
      %1873 = vmatpush1.bf16.msra.mxu0 %v1819
      %1874 = vmatprep.subr.bf16.mxu0 0
      %1875 = vmatpush1.bf16.msra.mxu0 0
      %1876 = vmatprep.subr.bf16.mxu0 0
      %1877 = vmatpush1.bf16.msra.mxu0 0
      %1878 = vmatprep.subr.bf16.mxu0 0
      %1879 = vmatpush1.bf16.msra.mxu0 0
      %1880 = vmatprep.subr.bf16.mxu0 0
      %1881 = vmatpush1.bf16.msra.mxu0 0
      %1882 = vmatprep.subr.bf16.mxu0 0
      %1883 = vmatpush1.bf16.msra.mxu0 0
      %1884 = vmatprep.subr.bf16.mxu0 0
      %1885 = vmatpush1.bf16.msra.mxu0 0
      %1886 = vmatprep.subr.bf16.mxu0 0
      %1887 = vmatpush1.bf16.msra.mxu0 0
      %1888 = vmatprep.subr.bf16.mxu0 0
      %1889 = vmatpush1.bf16.msra.mxu0 0
      %1890 = vmatprep.subr.bf16.mxu0 0
      %1891 = vmatpush1.bf16.msra.mxu0 0
      %1892 = vmatprep.subr.bf16.mxu0 0
      %1893 = vmatpush1.bf16.msra.mxu0 0
      %1894 = vmatprep.subr.bf16.mxu0 0
      %1895 = vmatpush1.bf16.msra.mxu0 0
      %1896 = vmatprep.subr.bf16.mxu0 0
      %1897 = vmatpush1.bf16.msra.mxu0 0
      %1898 = vmatprep.subr.bf16.mxu0 0
      %1899 = vmatpush1.bf16.msra.mxu0 0
      %1900 = vmatprep.subr.bf16.mxu0 0
      %1901 = vmatpush1.bf16.msra.mxu0 0
      %1902 = vmatprep.mubr.bf16.mxu0 0
      %1903 = vmatmul.mubr.bf16.gmra.mrb[0].mxu0 %v1823
      %v1904 = vpop.f32.mrb[0].mxu0
      %v1905 = vadd.f32 0.0, %v1904
      %v1906 = vpop.f32.mrb[0].mxu0
      %v1907 = vpop.f32.mrb[0].mxu0
      %v1908 = vadd.f32 0.0, %v1907
      %v1909 = vpop.f32.mrb[0].mxu0
      %1910 = vmatprep.mubr.bf16.mxu0 0
      %1911 = vmatmul.mubr.bf16.gmra.mrb[0].mxu0 %v1826
      %v1912 = vpop.f32.mrb[0].mxu0
      %v1913 = vadd.f32 0.0, %v1912
      %v1914 = vpop.f32.mrb[0].mxu0
      %v1915 = vpop.f32.mrb[0].mxu0
      %v1916 = vadd.f32 0.0, %v1915
      %v1917 = vpop.f32.mrb[0].mxu0
      %1918 = vmatprep.mubr.bf16.mxu0 0
      %1919 = vmatmul.mubr.bf16.gmra.mrb[0].mxu0 %v1829
      %v1920 = vpop.f32.mrb[0].mxu0
      %v1921 = vadd.f32 0.0, %v1920
      %v1922 = vpop.f32.mrb[0].mxu0
      %v1923 = vpop.f32.mrb[0].mxu0
      %v1924 = vadd.f32 0.0, %v1923
      %v1925 = vpop.f32.mrb[0].mxu0
      %1926 = vmatprep.mubr.bf16.mxu0 0
      %1927 = vmatmul.mubr.bf16.gmra.mrb[0].mxu0 %v1832
      %v1928 = vpop.f32.mrb[0].mxu0
      %v1929 = vadd.f32 0.0, %v1928
      %v1930 = vpop.f32.mrb[0].mxu0
      %v1931 = vpop.f32.mrb[0].mxu0
      %v1932 = vadd.f32 0.0, %v1931
      %v1933 = vpop.f32.mrb[0].mxu0
      %1934 = vmatprep.mubr.bf16.mxu0 0
      %1935 = vmatmul.mubr.bf16.gmra.mrb[0].mxu0 %v1835
      %v1936 = vpop.f32.mrb[0].mxu0
      %v1937 = vadd.f32 0.0, %v1936
      %v1938 = vpop.f32.mrb[0].mxu0
      %v1939 = vpop.f32.mrb[0].mxu0
      %v1940 = vadd.f32 0.0, %v1939
      %v1941 = vpop.f32.mrb[0].mxu0
      %1942 = vmatprep.mubr.bf16.mxu0 0
      %1943 = vmatmul.mubr.bf16.gmra.mrb[0].mxu0 %v1838
      %v1944 = vpop.f32.mrb[0].mxu0
      %v1945 = vadd.f32 0.0, %v1944
      %v1946 = vpop.f32.mrb[0].mxu0
      %v1947 = vpop.f32.mrb[0].mxu0
      %v1948 = vadd.f32 0.0, %v1947
      %v1949 = vpop.f32.mrb[0].mxu0
      %1950 = vmatprep.mubr.bf16.mxu0 0
      %1951 = vmatmul.mubr.bf16.gmra.mrb[0].mxu0 %v1841
      %v1952 = vpop.f32.mrb[0].mxu0
      %v1953 = vadd.f32 0.0, %v1952
      %v1954 = vpop.f32.mrb[0].mxu0
      %v1955 = vpop.f32.mrb[0].mxu0
      %v1956 = vadd.f32 0.0, %v1955
      %v1957 = vpop.f32.mrb[0].mxu0
      %1958 = vmatprep.mubr.bf16.mxu0 0
      %1959 = vmatmul.mubr.bf16.gmra.mrb[0].mxu0 %v1844
      %v1960 = vpop.f32.mrb[0].mxu0
      %v1961 = vadd.f32 0.0, %v1960
      %v1962 = vpop.f32.mrb[0].mxu0
      %v1963 = vpop.f32.mrb[0].mxu0
      %v1964 = vadd.f32 0.0, %v1963
      %v1965 = vpop.f32.mrb[0].mxu0
      %1966 = vmatprep.mubr.bf16.mxu0 0
      %1967 = vmatmul.mubr.bf16.gmra.mrb[0].mxu0 %v1847
      %v1968 = vpop.f32.mrb[0].mxu0
      %v1969 = vadd.f32 0.0, %v1968
      %v1970 = vpop.f32.mrb[0].mxu0
      %v1971 = vpop.f32.mrb[0].mxu0
      %v1972 = vadd.f32 0.0, %v1971
      %v1973 = vpop.f32.mrb[0].mxu0
      %1974 = vmatprep.mubr.bf16.mxu0 0
      %1975 = vmatmul.mubr.bf16.gmra.mrb[0].mxu0 %v1850
      %v1976 = vpop.f32.mrb[0].mxu0
      %v1977 = vadd.f32 0.0, %v1976
      %v1978 = vpop.f32.mrb[0].mxu0
      %v1979 = vpop.f32.mrb[0].mxu0
      %v1980 = vadd.f32 0.0, %v1979
      %v1981 = vpop.f32.mrb[0].mxu0
      %1982 = vmatprep.mubr.bf16.mxu0 0
      %1983 = vmatmul.mubr.bf16.gmra.mrb[0].mxu0 %v1853
      %v1984 = vpop.f32.mrb[0].mxu0
      %v1985 = vadd.f32 0.0, %v1984
      %v1986 = vpop.f32.mrb[0].mxu0
      %v1987 = vpop.f32.mrb[0].mxu0
      %v1988 = vadd.f32 0.0, %v1987
      %v1989 = vpop.f32.mrb[0].mxu0
      %1990 = vmatprep.mubr.bf16.mxu0 0
      %1991 = vmatmul.mubr.bf16.gmra.mrb[0].mxu0 %v1856
      %v1992 = vpop.f32.mrb[0].mxu0
      %v1993 = vadd.f32 0.0, %v1992
      %v1994 = vpop.f32.mrb[0].mxu0
      %v1995 = vpop.f32.mrb[0].mxu0
      %v1996 = vadd.f32 0.0, %v1995
      %v1997 = vpop.f32.mrb[0].mxu0
      %1998 = vmatprep.mubr.bf16.mxu0 0
      %1999 = vmatmul.mubr.bf16.gmra.mrb[0].mxu0 %v1859
      %v2000 = vpop.f32.mrb[0].mxu0
      %v2001 = vadd.f32 0.0, %v2000
      %v2002 = vpop.f32.mrb[0].mxu0
      %v2003 = vpop.f32.mrb[0].mxu0
      %v2004 = vadd.f32 0.0, %v2003
      %v2005 = vpop.f32.mrb[0].mxu0
      %2006 = vmatprep.mubr.bf16.mxu0 0
      %2007 = vmatmul.mubr.bf16.gmra.mrb[0].mxu0 %v1862
      %v2008 = vpop.f32.mrb[0].mxu0
      %v2009 = vadd.f32 0.0, %v2008
      %v2010 = vpop.f32.mrb[0].mxu0
      %v2011 = vpop.f32.mrb[0].mxu0
      %v2012 = vadd.f32 0.0, %v2011
      %v2013 = vpop.f32.mrb[0].mxu0
      %2014 = vmatprep.mubr.bf16.mxu0 0
      %2015 = vmatmul.mubr.bf16.gmra.mrb[0].mxu0 %v1865
      %v2016 = vpop.f32.mrb[0].mxu0
      %v2017 = vadd.f32 0.0, %v2016
      %v2018 = vpop.f32.mrb[0].mxu0
      %v2019 = vpop.f32.mrb[0].mxu0
      %v2020 = vadd.f32 0.0, %v2019
      %v2021 = vpop.f32.mrb[0].mxu0
      %2022 = vmatprep.mubr.bf16.mxu0 0
      %2023 = vmatmul.mubr.bf16.gmra.mrb[0].mxu0 %v1868
      %v2024 = vpop.f32.mrb[0].mxu0
      %v2025 = vadd.f32 0.0, %v2024
      %v2026 = vpop.f32.mrb[0].mxu0
      %v2027 = vpop.f32.mrb[0].mxu0
      %v2028 = vadd.f32 0.0, %v2027
      %v2029 = vpop.f32.mrb[0].mxu0
      %2030 = vdwg.mxu0
      %v2031 = vadd.f32 %v1565, %v1905
      %v2032 = vadd.f32 %v1566, %v1908
      %v2033 = vadd.f32 %v1567, %v1913
      %v2034 = vadd.f32 %v1568, %v1916
      %v2035 = vadd.f32 %v1569, %v1921
      %v2036 = vadd.f32 %v1570, %v1924
      %v2037 = vadd.f32 %v1571, %v1929
      %v2038 = vadd.f32 %v1572, %v1932
      %v2039 = vadd.f32 %v1573, %v1937
      %v2040 = vadd.f32 %v1574, %v1940
      %v2041 = vadd.f32 %v1575, %v1945
      %v2042 = vadd.f32 %v1576, %v1948
      %v2043 = vadd.f32 %v1577, %v1953
      %v2044 = vadd.f32 %v1578, %v1956
      %v2045 = vadd.f32 %v1579, %v1961
      %v2046 = vadd.f32 %v1580, %v1964
      %v2047 = vadd.f32 %v1581, %v1969
      %v2048 = vadd.f32 %v1582, %v1972
      %v2049 = vadd.f32 %v1583, %v1977
      %v2050 = vadd.f32 %v1584, %v1980
      %v2051 = vadd.f32 %v1585, %v1985
      %v2052 = vadd.f32 %v1586, %v1988
      %v2053 = vadd.f32 %v1587, %v1993
      %v2054 = vadd.f32 %v1588, %v1996
      %v2055 = vadd.f32 %v1589, %v2001
      %v2056 = vadd.f32 %v1590, %v2004
      %v2057 = vadd.f32 %v1591, %v2009
      %v2058 = vadd.f32 %v1592, %v2012
      %v2059 = vadd.f32 %v1593, %v2017
      %v2060 = vadd.f32 %v1594, %v2020
      %v2061 = vadd.f32 %v1595, %v2025
      %v2062 = vadd.f32 %v1596, %v2028
      %2063 = vset.pattern.permute.xlu0 4
      %2064 = vperm.xlu0 %2063, %v229
      %v2065 = vpop.permute.xlu0 %2064
      %2066 = vset.pattern.permute.xlu0 4
      %2067 = vperm.xlu0 %2066, %v230
      %v2068 = vpop.permute.xlu0 %2067
      %2069 = vset.pattern.permute.xlu0 4
      %2070 = vperm.xlu0 %2069, %v231
      %v2071 = vpop.permute.xlu0 %2070
      %2072 = vset.pattern.permute.xlu0 4
      %2073 = vperm.xlu0 %2072, %v232
      %v2074 = vpop.permute.xlu0 %2073
      %2075 = vset.pattern.permute.xlu0 4
      %2076 = vperm.xlu0 %2075, %v233
      %v2077 = vpop.permute.xlu0 %2076
      %2078 = vset.pattern.permute.xlu0 4
      %2079 = vperm.xlu0 %2078, %v234
      %v2080 = vpop.permute.xlu0 %2079
      %2081 = vset.pattern.permute.xlu0 4
      %2082 = vperm.xlu0 %2081, %v235
      %v2083 = vpop.permute.xlu0 %2082
      %2084 = vset.pattern.permute.xlu0 4
      %2085 = vperm.xlu0 %2084, %v236
      %v2086 = vpop.permute.xlu0 %2085
      %2087 = vset.pattern.permute.xlu0 4
      %2088 = vperm.xlu0 %2087, %v237
      %v2089 = vpop.permute.xlu0 %2088
      %2090 = vset.pattern.permute.xlu0 4
      %2091 = vperm.xlu0 %2090, %v238
      %v2092 = vpop.permute.xlu0 %2091
      %2093 = vset.pattern.permute.xlu0 4
      %2094 = vperm.xlu0 %2093, %v239
      %v2095 = vpop.permute.xlu0 %2094
      %2096 = vset.pattern.permute.xlu0 4
      %2097 = vperm.xlu0 %2096, %v240
      %v2098 = vpop.permute.xlu0 %2097
      %2099 = vset.pattern.permute.xlu0 4
      %2100 = vperm.xlu0 %2099, %v241
      %v2101 = vpop.permute.xlu0 %2100
      %2102 = vset.pattern.permute.xlu0 4
      %2103 = vperm.xlu0 %2102, %v242
      %v2104 = vpop.permute.xlu0 %2103
      %2105 = vset.pattern.permute.xlu0 4
      %2106 = vperm.xlu0 %2105, %v243
      %v2107 = vpop.permute.xlu0 %2106
      %2108 = vset.pattern.permute.xlu0 4
      %2109 = vperm.xlu0 %2108, %v244
      %v2110 = vpop.permute.xlu0 %2109
      %2111 = vset.pattern.permute.xlu0 4
      %2112 = vperm.xlu0 %2111, %v245
      %v2113 = vpop.permute.xlu0 %2112
      %2114 = vset.pattern.permute.xlu0 4
      %2115 = vperm.xlu0 %2114, %v246
      %v2116 = vpop.permute.xlu0 %2115
      %2117 = vset.pattern.permute.xlu0 4
      %2118 = vperm.xlu0 %2117, %v247
      %v2119 = vpop.permute.xlu0 %2118
      %2120 = vset.pattern.permute.xlu0 4
      %2121 = vperm.xlu0 %2120, %v248
      %v2122 = vpop.permute.xlu0 %2121
      %2123 = vset.pattern.permute.xlu0 4
      %2124 = vperm.xlu0 %2123, %v249
      %v2125 = vpop.permute.xlu0 %2124
      %2126 = vset.pattern.permute.xlu0 4
      %2127 = vperm.xlu0 %2126, %v250
      %v2128 = vpop.permute.xlu0 %2127
      %2129 = vset.pattern.permute.xlu0 4
      %2130 = vperm.xlu0 %2129, %v251
      %v2131 = vpop.permute.xlu0 %2130
      %2132 = vset.pattern.permute.xlu0 4
      %2133 = vperm.xlu0 %2132, %v252
      %v2134 = vpop.permute.xlu0 %2133
      %2135 = vset.pattern.permute.xlu0 4
      %2136 = vperm.xlu0 %2135, %v253
      %v2137 = vpop.permute.xlu0 %2136
      %2138 = vset.pattern.permute.xlu0 4
      %2139 = vperm.xlu0 %2138, %v254
      %v2140 = vpop.permute.xlu0 %2139
      %2141 = vset.pattern.permute.xlu0 4
      %2142 = vperm.xlu0 %2141, %v255
      %v2143 = vpop.permute.xlu0 %2142
      %2144 = vset.pattern.permute.xlu0 4
      %2145 = vperm.xlu0 %2144, %v256
      %v2146 = vpop.permute.xlu0 %2145
      %2147 = vset.pattern.permute.xlu0 4
      %2148 = vperm.xlu0 %2147, %v257
      %v2149 = vpop.permute.xlu0 %2148
      %2150 = vset.pattern.permute.xlu0 4
      %2151 = vperm.xlu0 %2150, %v258
      %v2152 = vpop.permute.xlu0 %2151
      %2153 = vset.pattern.permute.xlu0 4
      %2154 = vperm.xlu0 %2153, %v259
      %v2155 = vpop.permute.xlu0 %2154
      %2156 = vset.pattern.permute.xlu0 4
      %2157 = vperm.xlu0 %2156, %v260
      %v2158 = vpop.permute.xlu0 %2157
      %vm2159 = vcmp.eq.s32.totalorder %v2065, %v262
      %vm2160 = vcmp.eq.s32.totalorder %v2068, %v262
      %vm2161 = vcmp.eq.s32.totalorder %v2071, %v262
      %vm2162 = vcmp.eq.s32.totalorder %v2074, %v262
      %vm2163 = vcmp.eq.s32.totalorder %v2077, %v262
      %vm2164 = vcmp.eq.s32.totalorder %v2080, %v262
      %vm2165 = vcmp.eq.s32.totalorder %v2083, %v262
      %vm2166 = vcmp.eq.s32.totalorder %v2086, %v262
      %vm2167 = vcmp.eq.s32.totalorder %v2089, %v262
      %vm2168 = vcmp.eq.s32.totalorder %v2092, %v262
      %vm2169 = vcmp.eq.s32.totalorder %v2095, %v262
      %vm2170 = vcmp.eq.s32.totalorder %v2098, %v262
      %vm2171 = vcmp.eq.s32.totalorder %v2101, %v262
      %vm2172 = vcmp.eq.s32.totalorder %v2104, %v262
      %vm2173 = vcmp.eq.s32.totalorder %v2107, %v262
      %vm2174 = vcmp.eq.s32.totalorder %v2110, %v262
      %vm2175 = vcmp.eq.s32.totalorder %v2113, %v262
      %vm2176 = vcmp.eq.s32.totalorder %v2116, %v262
      %vm2177 = vcmp.eq.s32.totalorder %v2119, %v262
      %vm2178 = vcmp.eq.s32.totalorder %v2122, %v262
      %vm2179 = vcmp.eq.s32.totalorder %v2125, %v262
      %vm2180 = vcmp.eq.s32.totalorder %v2128, %v262
      %vm2181 = vcmp.eq.s32.totalorder %v2131, %v262
      %vm2182 = vcmp.eq.s32.totalorder %v2134, %v262
      %vm2183 = vcmp.eq.s32.totalorder %v2137, %v262
      %vm2184 = vcmp.eq.s32.totalorder %v2140, %v262
      %vm2185 = vcmp.eq.s32.totalorder %v2143, %v262
      %vm2186 = vcmp.eq.s32.totalorder %v2146, %v262
      %vm2187 = vcmp.eq.s32.totalorder %v2149, %v262
      %vm2188 = vcmp.eq.s32.totalorder %v2152, %v262
      %vm2189 = vcmp.eq.s32.totalorder %v2155, %v262
      %vm2190 = vcmp.eq.s32.totalorder %v2158, %v262
      %v2191 = vsel %vm2159, 1, 0
      %v2192 = vsel %vm2160, 1, 0
      %v2193 = vsel %vm2161, 1, 0
      %v2194 = vsel %vm2162, 1, 0
      %v2195 = vsel %vm2163, 1, 0
      %v2196 = vsel %vm2164, 1, 0
      %v2197 = vsel %vm2165, 1, 0
      %v2198 = vsel %vm2166, 1, 0
      %v2199 = vsel %vm2167, 1, 0
      %v2200 = vsel %vm2168, 1, 0
      %v2201 = vsel %vm2169, 1, 0
      %v2202 = vsel %vm2170, 1, 0
      %v2203 = vsel %vm2171, 1, 0
      %v2204 = vsel %vm2172, 1, 0
      %v2205 = vsel %vm2173, 1, 0
      %v2206 = vsel %vm2174, 1, 0
      %v2207 = vsel %vm2175, 1, 0
      %v2208 = vsel %vm2176, 1, 0
      %v2209 = vsel %vm2177, 1, 0
      %v2210 = vsel %vm2178, 1, 0
      %v2211 = vsel %vm2179, 1, 0
      %v2212 = vsel %vm2180, 1, 0
      %v2213 = vsel %vm2181, 1, 0
      %v2214 = vsel %vm2182, 1, 0
      %v2215 = vsel %vm2183, 1, 0
      %v2216 = vsel %vm2184, 1, 0
      %v2217 = vsel %vm2185, 1, 0
      %v2218 = vsel %vm2186, 1, 0
      %v2219 = vsel %vm2187, 1, 0
      %v2220 = vsel %vm2188, 1, 0
      %v2221 = vsel %vm2189, 1, 0
      %v2222 = vsel %vm2190, 1, 0
      %v2223 = vcvt.s32.f32 %v2191
      %v2224 = vcvt.s32.f32 %v2192
      %v2225 = vcvt.s32.f32 %v2193
      %v2226 = vcvt.s32.f32 %v2194
      %v2227 = vcvt.s32.f32 %v2195
      %v2228 = vcvt.s32.f32 %v2196
      %v2229 = vcvt.s32.f32 %v2197
      %v2230 = vcvt.s32.f32 %v2198
      %v2231 = vcvt.s32.f32 %v2199
      %v2232 = vcvt.s32.f32 %v2200
      %v2233 = vcvt.s32.f32 %v2201
      %v2234 = vcvt.s32.f32 %v2202
      %v2235 = vcvt.s32.f32 %v2203
      %v2236 = vcvt.s32.f32 %v2204
      %v2237 = vcvt.s32.f32 %v2205
      %v2238 = vcvt.s32.f32 %v2206
      %v2239 = vcvt.s32.f32 %v2207
      %v2240 = vcvt.s32.f32 %v2208
      %v2241 = vcvt.s32.f32 %v2209
      %v2242 = vcvt.s32.f32 %v2210
      %v2243 = vcvt.s32.f32 %v2211
      %v2244 = vcvt.s32.f32 %v2212
      %v2245 = vcvt.s32.f32 %v2213
      %v2246 = vcvt.s32.f32 %v2214
      %v2247 = vcvt.s32.f32 %v2215
      %v2248 = vcvt.s32.f32 %v2216
      %v2249 = vcvt.s32.f32 %v2217
      %v2250 = vcvt.s32.f32 %v2218
      %v2251 = vcvt.s32.f32 %v2219
      %v2252 = vcvt.s32.f32 %v2220
      %v2253 = vcvt.s32.f32 %v2221
      %v2254 = vcvt.s32.f32 %v2222
      %v2255 = vpack.c.bf16 %v2224, %v2223
      %v2256 = vpack.c.bf16 %v2226, %v2225
      %v2257 = vpack.c.bf16 %v2228, %v2227
      %v2258 = vpack.c.bf16 %v2230, %v2229
      %v2259 = vpack.c.bf16 %v2232, %v2231
      %v2260 = vpack.c.bf16 %v2234, %v2233
      %v2261 = vpack.c.bf16 %v2236, %v2235
      %v2262 = vpack.c.bf16 %v2238, %v2237
      %v2263 = vpack.c.bf16 %v2240, %v2239
      %v2264 = vpack.c.bf16 %v2242, %v2241
      %v2265 = vpack.c.bf16 %v2244, %v2243
      %v2266 = vpack.c.bf16 %v2246, %v2245
      %v2267 = vpack.c.bf16 %v2248, %v2247
      %v2268 = vpack.c.bf16 %v2250, %v2249
      %v2269 = vpack.c.bf16 %v2252, %v2251
      %v2270 = vpack.c.bf16 %v2254, %v2253
      %s2271 = scalar_lea.vmem %s1, 64
      %v2272 = vld [vmem:[%s2271] sm:$0xf]
      %v2273 = vld [vmem:[%s2271 + $0x4] sm:$0xf]
      %v2274 = vld [vmem:[%s2271 + $0x8] sm:$0xf]
      %v2275 = vld [vmem:[%s2271 + $0xc] sm:$0xf]
      %v2280 = vunpack.c.l.b16 %v2272
      %v2281 = vunpack.c.l.b16 %v2273
      %v2282 = vunpack.c.l.b16 %v2274
      %v2283 = vunpack.c.l.b16 %v2275
      %v2284 = vpack.c.b16 %v2281, %v2280
      %v2285 = vpack.c.b16 %v2283, %v2282
      %v2289 = vsel %vm700, %v2255, 0
      %v2292 = vsel %vm700, %v2256, 0
      %v2295 = vsel %vm700, %v2257, 0
      %v2298 = vsel %vm700, %v2258, 0
      %v2301 = vsel %vm700, %v2259, 0
      %v2304 = vsel %vm700, %v2260, 0
      %v2307 = vsel %vm700, %v2261, 0
      %v2310 = vsel %vm700, %v2262, 0
      %v2313 = vsel %vm700, %v2263, 0
      %v2316 = vsel %vm700, %v2264, 0
      %v2319 = vsel %vm700, %v2265, 0
      %v2322 = vsel %vm700, %v2266, 0
      %v2325 = vsel %vm700, %v2267, 0
      %v2328 = vsel %vm700, %v2268, 0
      %v2331 = vsel %vm700, %v2269, 0
      %v2334 = vsel %vm700, %v2270, 0
      %2336 = vmatprep.subr.bf16.mxu0 0
      %2337 = vmatpush1.bf16.msra.mxu0 %v2284
      %2338 = vmatprep.subr.bf16.mxu0 0
      %2339 = vmatpush1.bf16.msra.mxu0 %v2285
      %2340 = vmatprep.subr.bf16.mxu0 0
      %2341 = vmatpush1.bf16.msra.mxu0 0
      %2342 = vmatprep.subr.bf16.mxu0 0
      %2343 = vmatpush1.bf16.msra.mxu0 0
      %2344 = vmatprep.subr.bf16.mxu0 0
      %2345 = vmatpush1.bf16.msra.mxu0 0
      %2346 = vmatprep.subr.bf16.mxu0 0
      %2347 = vmatpush1.bf16.msra.mxu0 0
      %2348 = vmatprep.subr.bf16.mxu0 0
      %2349 = vmatpush1.bf16.msra.mxu0 0
      %2350 = vmatprep.subr.bf16.mxu0 0
      %2351 = vmatpush1.bf16.msra.mxu0 0
      %2352 = vmatprep.subr.bf16.mxu0 0
      %2353 = vmatpush1.bf16.msra.mxu0 0
      %2354 = vmatprep.subr.bf16.mxu0 0
      %2355 = vmatpush1.bf16.msra.mxu0 0
      %2356 = vmatprep.subr.bf16.mxu0 0
      %2357 = vmatpush1.bf16.msra.mxu0 0
      %2358 = vmatprep.subr.bf16.mxu0 0
      %2359 = vmatpush1.bf16.msra.mxu0 0
      %2360 = vmatprep.subr.bf16.mxu0 0
      %2361 = vmatpush1.bf16.msra.mxu0 0
      %2362 = vmatprep.subr.bf16.mxu0 0
      %2363 = vmatpush1.bf16.msra.mxu0 0
      %2364 = vmatprep.subr.bf16.mxu0 0
      %2365 = vmatpush1.bf16.msra.mxu0 0
      %2366 = vmatprep.subr.bf16.mxu0 0
      %2367 = vmatpush1.bf16.msra.mxu0 0
      %2368 = vmatprep.mubr.bf16.mxu0 0
      %2369 = vmatmul.mubr.bf16.gmra.mrb[0].mxu0 %v2289
      %v2370 = vpop.f32.mrb[0].mxu0
      %v2371 = vadd.f32 0.0, %v2370
      %v2372 = vpop.f32.mrb[0].mxu0
      %v2373 = vpop.f32.mrb[0].mxu0
      %v2374 = vadd.f32 0.0, %v2373
      %v2375 = vpop.f32.mrb[0].mxu0
      %2376 = vmatprep.mubr.bf16.mxu0 0
      %2377 = vmatmul.mubr.bf16.gmra.mrb[0].mxu0 %v2292
      %v2378 = vpop.f32.mrb[0].mxu0
      %v2379 = vadd.f32 0.0, %v2378
      %v2380 = vpop.f32.mrb[0].mxu0
      %v2381 = vpop.f32.mrb[0].mxu0
      %v2382 = vadd.f32 0.0, %v2381
      %v2383 = vpop.f32.mrb[0].mxu0
      %2384 = vmatprep.mubr.bf16.mxu0 0
      %2385 = vmatmul.mubr.bf16.gmra.mrb[0].mxu0 %v2295
      %v2386 = vpop.f32.mrb[0].mxu0
      %v2387 = vadd.f32 0.0, %v2386
      %v2388 = vpop.f32.mrb[0].mxu0
      %v2389 = vpop.f32.mrb[0].mxu0
      %v2390 = vadd.f32 0.0, %v2389
      %v2391 = vpop.f32.mrb[0].mxu0
      %2392 = vmatprep.mubr.bf16.mxu0 0
      %2393 = vmatmul.mubr.bf16.gmra.mrb[0].mxu0 %v2298
      %v2394 = vpop.f32.mrb[0].mxu0
      %v2395 = vadd.f32 0.0, %v2394
      %v2396 = vpop.f32.mrb[0].mxu0
      %v2397 = vpop.f32.mrb[0].mxu0
      %v2398 = vadd.f32 0.0, %v2397
      %v2399 = vpop.f32.mrb[0].mxu0
      %2400 = vmatprep.mubr.bf16.mxu0 0
      %2401 = vmatmul.mubr.bf16.gmra.mrb[0].mxu0 %v2301
      %v2402 = vpop.f32.mrb[0].mxu0
      %v2403 = vadd.f32 0.0, %v2402
      %v2404 = vpop.f32.mrb[0].mxu0
      %v2405 = vpop.f32.mrb[0].mxu0
      %v2406 = vadd.f32 0.0, %v2405
      %v2407 = vpop.f32.mrb[0].mxu0
      %2408 = vmatprep.mubr.bf16.mxu0 0
      %2409 = vmatmul.mubr.bf16.gmra.mrb[0].mxu0 %v2304
      %v2410 = vpop.f32.mrb[0].mxu0
      %v2411 = vadd.f32 0.0, %v2410
      %v2412 = vpop.f32.mrb[0].mxu0
      %v2413 = vpop.f32.mrb[0].mxu0
      %v2414 = vadd.f32 0.0, %v2413
      %v2415 = vpop.f32.mrb[0].mxu0
      %2416 = vmatprep.mubr.bf16.mxu0 0
      %2417 = vmatmul.mubr.bf16.gmra.mrb[0].mxu0 %v2307
      %v2418 = vpop.f32.mrb[0].mxu0
      %v2419 = vadd.f32 0.0, %v2418
      %v2420 = vpop.f32.mrb[0].mxu0
      %v2421 = vpop.f32.mrb[0].mxu0
      %v2422 = vadd.f32 0.0, %v2421
      %v2423 = vpop.f32.mrb[0].mxu0
      %2424 = vmatprep.mubr.bf16.mxu0 0
      %2425 = vmatmul.mubr.bf16.gmra.mrb[0].mxu0 %v2310
      %v2426 = vpop.f32.mrb[0].mxu0
      %v2427 = vadd.f32 0.0, %v2426
      %v2428 = vpop.f32.mrb[0].mxu0
      %v2429 = vpop.f32.mrb[0].mxu0
      %v2430 = vadd.f32 0.0, %v2429
      %v2431 = vpop.f32.mrb[0].mxu0
      %2432 = vmatprep.mubr.bf16.mxu0 0
      %2433 = vmatmul.mubr.bf16.gmra.mrb[0].mxu0 %v2313
      %v2434 = vpop.f32.mrb[0].mxu0
      %v2435 = vadd.f32 0.0, %v2434
      %v2436 = vpop.f32.mrb[0].mxu0
      %v2437 = vpop.f32.mrb[0].mxu0
      %v2438 = vadd.f32 0.0, %v2437
      %v2439 = vpop.f32.mrb[0].mxu0
      %2440 = vmatprep.mubr.bf16.mxu0 0
      %2441 = vmatmul.mubr.bf16.gmra.mrb[0].mxu0 %v2316
      %v2442 = vpop.f32.mrb[0].mxu0
      %v2443 = vadd.f32 0.0, %v2442
      %v2444 = vpop.f32.mrb[0].mxu0
      %v2445 = vpop.f32.mrb[0].mxu0
      %v2446 = vadd.f32 0.0, %v2445
      %v2447 = vpop.f32.mrb[0].mxu0
      %2448 = vmatprep.mubr.bf16.mxu0 0
      %2449 = vmatmul.mubr.bf16.gmra.mrb[0].mxu0 %v2319
      %v2450 = vpop.f32.mrb[0].mxu0
      %v2451 = vadd.f32 0.0, %v2450
      %v2452 = vpop.f32.mrb[0].mxu0
      %v2453 = vpop.f32.mrb[0].mxu0
      %v2454 = vadd.f32 0.0, %v2453
      %v2455 = vpop.f32.mrb[0].mxu0
      %2456 = vmatprep.mubr.bf16.mxu0 0
      %2457 = vmatmul.mubr.bf16.gmra.mrb[0].mxu0 %v2322
      %v2458 = vpop.f32.mrb[0].mxu0
      %v2459 = vadd.f32 0.0, %v2458
      %v2460 = vpop.f32.mrb[0].mxu0
      %v2461 = vpop.f32.mrb[0].mxu0
      %v2462 = vadd.f32 0.0, %v2461
      %v2463 = vpop.f32.mrb[0].mxu0
      %2464 = vmatprep.mubr.bf16.mxu0 0
      %2465 = vmatmul.mubr.bf16.gmra.mrb[0].mxu0 %v2325
      %v2466 = vpop.f32.mrb[0].mxu0
      %v2467 = vadd.f32 0.0, %v2466
      %v2468 = vpop.f32.mrb[0].mxu0
      %v2469 = vpop.f32.mrb[0].mxu0
      %v2470 = vadd.f32 0.0, %v2469
      %v2471 = vpop.f32.mrb[0].mxu0
      %2472 = vmatprep.mubr.bf16.mxu0 0
      %2473 = vmatmul.mubr.bf16.gmra.mrb[0].mxu0 %v2328
      %v2474 = vpop.f32.mrb[0].mxu0
      %v2475 = vadd.f32 0.0, %v2474
      %v2476 = vpop.f32.mrb[0].mxu0
      %v2477 = vpop.f32.mrb[0].mxu0
      %v2478 = vadd.f32 0.0, %v2477
      %v2479 = vpop.f32.mrb[0].mxu0
      %2480 = vmatprep.mubr.bf16.mxu0 0
      %2481 = vmatmul.mubr.bf16.gmra.mrb[0].mxu0 %v2331
      %v2482 = vpop.f32.mrb[0].mxu0
      %v2483 = vadd.f32 0.0, %v2482
      %v2484 = vpop.f32.mrb[0].mxu0
      %v2485 = vpop.f32.mrb[0].mxu0
      %v2486 = vadd.f32 0.0, %v2485
      %v2487 = vpop.f32.mrb[0].mxu0
      %2488 = vmatprep.mubr.bf16.mxu0 0
      %2489 = vmatmul.mubr.bf16.gmra.mrb[0].mxu0 %v2334
      %v2490 = vpop.f32.mrb[0].mxu0
      %v2491 = vadd.f32 0.0, %v2490
      %v2492 = vpop.f32.mrb[0].mxu0
      %v2493 = vpop.f32.mrb[0].mxu0
      %v2494 = vadd.f32 0.0, %v2493
      %v2495 = vpop.f32.mrb[0].mxu0
      %2496 = vdwg.mxu0
      %v2497 = vadd.f32 %v2031, %v2371
      %v2498 = vadd.f32 %v2032, %v2374
      %v2499 = vadd.f32 %v2033, %v2379
      %v2500 = vadd.f32 %v2034, %v2382
      %v2501 = vadd.f32 %v2035, %v2387
      %v2502 = vadd.f32 %v2036, %v2390
      %v2503 = vadd.f32 %v2037, %v2395
      %v2504 = vadd.f32 %v2038, %v2398
      %v2505 = vadd.f32 %v2039, %v2403
      %v2506 = vadd.f32 %v2040, %v2406
      %v2507 = vadd.f32 %v2041, %v2411
      %v2508 = vadd.f32 %v2042, %v2414
      %v2509 = vadd.f32 %v2043, %v2419
      %v2510 = vadd.f32 %v2044, %v2422
      %v2511 = vadd.f32 %v2045, %v2427
      %v2512 = vadd.f32 %v2046, %v2430
      %v2513 = vadd.f32 %v2047, %v2435
      %v2514 = vadd.f32 %v2048, %v2438
      %v2515 = vadd.f32 %v2049, %v2443
      %v2516 = vadd.f32 %v2050, %v2446
      %v2517 = vadd.f32 %v2051, %v2451
      %v2518 = vadd.f32 %v2052, %v2454
      %v2519 = vadd.f32 %v2053, %v2459
      %v2520 = vadd.f32 %v2054, %v2462
      %v2521 = vadd.f32 %v2055, %v2467
      %v2522 = vadd.f32 %v2056, %v2470
      %v2523 = vadd.f32 %v2057, %v2475
      %v2524 = vadd.f32 %v2058, %v2478
      %v2525 = vadd.f32 %v2059, %v2483
      %v2526 = vadd.f32 %v2060, %v2486
      %v2527 = vadd.f32 %v2061, %v2491
      %v2528 = vadd.f32 %v2062, %v2494
      %v2529 = vld [vmem:[%s2] sm:$0x1]
      %v2531 = vlaneseq
      %v2532 = vshrl.u32 %v2531, 7
      %v2533 = vsub.s32 0, %v2532
      %v2534 = vrot.slane %v2529, %v2533
      %v2536 = vadd.f32 %v2497, %v2534
      %v2537 = vadd.f32 %v2498, %v2534
      %v2538 = vadd.f32 %v2499, %v2534
      %v2539 = vadd.f32 %v2500, %v2534
      %v2540 = vadd.f32 %v2501, %v2534
      %v2541 = vadd.f32 %v2502, %v2534
      %v2542 = vadd.f32 %v2503, %v2534
      %v2543 = vadd.f32 %v2504, %v2534
      %v2544 = vadd.f32 %v2505, %v2534
      %v2545 = vadd.f32 %v2506, %v2534
      %v2546 = vadd.f32 %v2507, %v2534
      %v2547 = vadd.f32 %v2508, %v2534
      %v2548 = vadd.f32 %v2509, %v2534
      %v2549 = vadd.f32 %v2510, %v2534
      %v2550 = vadd.f32 %v2511, %v2534
      %v2551 = vadd.f32 %v2512, %v2534
      %v2552 = vadd.f32 %v2513, %v2534
      %v2553 = vadd.f32 %v2514, %v2534
      %v2554 = vadd.f32 %v2515, %v2534
      %v2555 = vadd.f32 %v2516, %v2534
      %v2556 = vadd.f32 %v2517, %v2534
      %v2557 = vadd.f32 %v2518, %v2534
      %v2558 = vadd.f32 %v2519, %v2534
      %v2559 = vadd.f32 %v2520, %v2534
      %v2560 = vadd.f32 %v2521, %v2534
      %v2561 = vadd.f32 %v2522, %v2534
      %v2562 = vadd.f32 %v2523, %v2534
      %v2563 = vadd.f32 %v2524, %v2534
      %v2564 = vadd.f32 %v2525, %v2534
      %v2565 = vadd.f32 %v2526, %v2534
      %v2566 = vadd.f32 %v2527, %v2534
      %v2567 = vadd.f32 %v2528, %v2534
      %v2568 = vmax.f32 %v2536, 0.0
      %v2569 = vmax.f32 %v2537, 0.0
      %v2570 = vmax.f32 %v2538, 0.0
      %v2571 = vmax.f32 %v2539, 0.0
      %v2572 = vmax.f32 %v2540, 0.0
      %v2573 = vmax.f32 %v2541, 0.0
      %v2574 = vmax.f32 %v2542, 0.0
      %v2575 = vmax.f32 %v2543, 0.0
      %v2576 = vmax.f32 %v2544, 0.0
      %v2577 = vmax.f32 %v2545, 0.0
      %v2578 = vmax.f32 %v2546, 0.0
      %v2579 = vmax.f32 %v2547, 0.0
      %v2580 = vmax.f32 %v2548, 0.0
      %v2581 = vmax.f32 %v2549, 0.0
      %v2582 = vmax.f32 %v2550, 0.0
      %v2583 = vmax.f32 %v2551, 0.0
      %v2584 = vmax.f32 %v2552, 0.0
      %v2585 = vmax.f32 %v2553, 0.0
      %v2586 = vmax.f32 %v2554, 0.0
      %v2587 = vmax.f32 %v2555, 0.0
      %v2588 = vmax.f32 %v2556, 0.0
      %v2589 = vmax.f32 %v2557, 0.0
      %v2590 = vmax.f32 %v2558, 0.0
      %v2591 = vmax.f32 %v2559, 0.0
      %v2592 = vmax.f32 %v2560, 0.0
      %v2593 = vmax.f32 %v2561, 0.0
      %v2594 = vmax.f32 %v2562, 0.0
      %v2595 = vmax.f32 %v2563, 0.0
      %v2596 = vmax.f32 %v2564, 0.0
      %v2597 = vmax.f32 %v2565, 0.0
      %v2598 = vmax.f32 %v2566, 0.0
      %v2599 = vmax.f32 %v2567, 0.0
      %vm2600 = vcmask 130048
      %v2601 = vsel %vm2600, %v2568, -inf
      %v2602 = vsel %vm2600, %v2569, -inf
      %v2603 = vmax.f32 %v2601, %v2602
      %v2604 = vrot.slane %v2603, 4
      %v2605 = vmax.f32 %v2603, %v2604
      %v2606 = vrot.slane %v2605, 2
      %v2607 = vmax.f32 %v2605, %v2606
      %v2608 = vrot.slane %v2607, 1
      %v2609 = vmax.f32 %v2607, %v2608
      %v2610 = vsel %vm2600, %v2570, -inf
      %v2611 = vsel %vm2600, %v2571, -inf
      %v2612 = vmax.f32 %v2610, %v2611
      %v2613 = vrot.slane %v2612, 4
      %v2614 = vmax.f32 %v2612, %v2613
      %v2615 = vrot.slane %v2614, 2
      %v2616 = vmax.f32 %v2614, %v2615
      %v2617 = vrot.slane %v2616, 1
      %v2618 = vmax.f32 %v2616, %v2617
      %v2619 = vsel %vm2600, %v2572, -inf
      %v2620 = vsel %vm2600, %v2573, -inf
      %v2621 = vmax.f32 %v2619, %v2620
      %v2622 = vrot.slane %v2621, 4
      %v2623 = vmax.f32 %v2621, %v2622
      %v2624 = vrot.slane %v2623, 2
      %v2625 = vmax.f32 %v2623, %v2624
      %v2626 = vrot.slane %v2625, 1
      %v2627 = vmax.f32 %v2625, %v2626
      %v2628 = vsel %vm2600, %v2574, -inf
      %v2629 = vsel %vm2600, %v2575, -inf
      %v2630 = vmax.f32 %v2628, %v2629
      %v2631 = vrot.slane %v2630, 4
      %v2632 = vmax.f32 %v2630, %v2631
      %v2633 = vrot.slane %v2632, 2
      %v2634 = vmax.f32 %v2632, %v2633
      %v2635 = vrot.slane %v2634, 1
      %v2636 = vmax.f32 %v2634, %v2635
      %v2637 = vsel %vm2600, %v2576, -inf
      %v2638 = vsel %vm2600, %v2577, -inf
      %v2639 = vmax.f32 %v2637, %v2638
      %v2640 = vrot.slane %v2639, 4
      %v2641 = vmax.f32 %v2639, %v2640
      %v2642 = vrot.slane %v2641, 2
      %v2643 = vmax.f32 %v2641, %v2642
      %v2644 = vrot.slane %v2643, 1
      %v2645 = vmax.f32 %v2643, %v2644
      %v2646 = vsel %vm2600, %v2578, -inf
      %v2647 = vsel %vm2600, %v2579, -inf
      %v2648 = vmax.f32 %v2646, %v2647
      %v2649 = vrot.slane %v2648, 4
      %v2650 = vmax.f32 %v2648, %v2649
      %v2651 = vrot.slane %v2650, 2
      %v2652 = vmax.f32 %v2650, %v2651
      %v2653 = vrot.slane %v2652, 1
      %v2654 = vmax.f32 %v2652, %v2653
      %v2655 = vsel %vm2600, %v2580, -inf
      %v2656 = vsel %vm2600, %v2581, -inf
      %v2657 = vmax.f32 %v2655, %v2656
      %v2658 = vrot.slane %v2657, 4
      %v2659 = vmax.f32 %v2657, %v2658
      %v2660 = vrot.slane %v2659, 2
      %v2661 = vmax.f32 %v2659, %v2660
      %v2662 = vrot.slane %v2661, 1
      %v2663 = vmax.f32 %v2661, %v2662
      %v2664 = vsel %vm2600, %v2582, -inf
      %v2665 = vsel %vm2600, %v2583, -inf
      %v2666 = vmax.f32 %v2664, %v2665
      %v2667 = vrot.slane %v2666, 4
      %v2668 = vmax.f32 %v2666, %v2667
      %v2669 = vrot.slane %v2668, 2
      %v2670 = vmax.f32 %v2668, %v2669
      %v2671 = vrot.slane %v2670, 1
      %v2672 = vmax.f32 %v2670, %v2671
      %v2673 = vsel %vm2600, %v2584, -inf
      %v2674 = vsel %vm2600, %v2585, -inf
      %v2675 = vmax.f32 %v2673, %v2674
      %v2676 = vrot.slane %v2675, 4
      %v2677 = vmax.f32 %v2675, %v2676
      %v2678 = vrot.slane %v2677, 2
      %v2679 = vmax.f32 %v2677, %v2678
      %v2680 = vrot.slane %v2679, 1
      %v2681 = vmax.f32 %v2679, %v2680
      %v2682 = vsel %vm2600, %v2586, -inf
      %v2683 = vsel %vm2600, %v2587, -inf
      %v2684 = vmax.f32 %v2682, %v2683
      %v2685 = vrot.slane %v2684, 4
      %v2686 = vmax.f32 %v2684, %v2685
      %v2687 = vrot.slane %v2686, 2
      %v2688 = vmax.f32 %v2686, %v2687
      %v2689 = vrot.slane %v2688, 1
      %v2690 = vmax.f32 %v2688, %v2689
      %v2691 = vsel %vm2600, %v2588, -inf
      %v2692 = vsel %vm2600, %v2589, -inf
      %v2693 = vmax.f32 %v2691, %v2692
      %v2694 = vrot.slane %v2693, 4
      %v2695 = vmax.f32 %v2693, %v2694
      %v2696 = vrot.slane %v2695, 2
      %v2697 = vmax.f32 %v2695, %v2696
      %v2698 = vrot.slane %v2697, 1
      %v2699 = vmax.f32 %v2697, %v2698
      %v2700 = vsel %vm2600, %v2590, -inf
      %v2701 = vsel %vm2600, %v2591, -inf
      %v2702 = vmax.f32 %v2700, %v2701
      %v2703 = vrot.slane %v2702, 4
      %v2704 = vmax.f32 %v2702, %v2703
      %v2705 = vrot.slane %v2704, 2
      %v2706 = vmax.f32 %v2704, %v2705
      %v2707 = vrot.slane %v2706, 1
      %v2708 = vmax.f32 %v2706, %v2707
      %v2709 = vsel %vm2600, %v2592, -inf
      %v2710 = vsel %vm2600, %v2593, -inf
      %v2711 = vmax.f32 %v2709, %v2710
      %v2712 = vrot.slane %v2711, 4
      %v2713 = vmax.f32 %v2711, %v2712
      %v2714 = vrot.slane %v2713, 2
      %v2715 = vmax.f32 %v2713, %v2714
      %v2716 = vrot.slane %v2715, 1
      %v2717 = vmax.f32 %v2715, %v2716
      %v2718 = vsel %vm2600, %v2594, -inf
      %v2719 = vsel %vm2600, %v2595, -inf
      %v2720 = vmax.f32 %v2718, %v2719
      %v2721 = vrot.slane %v2720, 4
      %v2722 = vmax.f32 %v2720, %v2721
      %v2723 = vrot.slane %v2722, 2
      %v2724 = vmax.f32 %v2722, %v2723
      %v2725 = vrot.slane %v2724, 1
      %v2726 = vmax.f32 %v2724, %v2725
      %v2727 = vsel %vm2600, %v2596, -inf
      %v2728 = vsel %vm2600, %v2597, -inf
      %v2729 = vmax.f32 %v2727, %v2728
      %v2730 = vrot.slane %v2729, 4
      %v2731 = vmax.f32 %v2729, %v2730
      %v2732 = vrot.slane %v2731, 2
      %v2733 = vmax.f32 %v2731, %v2732
      %v2734 = vrot.slane %v2733, 1
      %v2735 = vmax.f32 %v2733, %v2734
      %v2736 = vsel %vm2600, %v2598, -inf
      %v2737 = vsel %vm2600, %v2599, -inf
      %v2738 = vmax.f32 %v2736, %v2737
      %v2739 = vrot.slane %v2738, 4
      %v2740 = vmax.f32 %v2738, %v2739
      %v2741 = vrot.slane %v2740, 2
      %v2742 = vmax.f32 %v2740, %v2741
      %v2743 = vrot.slane %v2742, 1
      %v2744 = vmax.f32 %v2742, %v2743
      %v2745 = vld [vmem:[%s3] sm:$0x1]
      %v2746 = vlaneseq
      %v2747 = vshrl.u32 %v2746, 7
      %v2748 = vsub.s32 0, %v2747
      %v2749 = vrot.slane %v2745, %v2748
      %v2750 = vmul.f32 %v2609, %v2749
      %v2751 = vmul.f32 %v2618, %v2749
      %v2752 = vmul.f32 %v2627, %v2749
      %v2753 = vmul.f32 %v2636, %v2749
      %v2754 = vmul.f32 %v2645, %v2749
      %v2755 = vmul.f32 %v2654, %v2749
      %v2756 = vmul.f32 %v2663, %v2749
      %v2757 = vmul.f32 %v2672, %v2749
      %v2758 = vmul.f32 %v2681, %v2749
      %v2759 = vmul.f32 %v2690, %v2749
      %v2760 = vmul.f32 %v2699, %v2749
      %v2761 = vmul.f32 %v2708, %v2749
      %v2762 = vmul.f32 %v2717, %v2749
      %v2763 = vmul.f32 %v2726, %v2749
      %v2764 = vmul.f32 %v2735, %v2749
      %v2765 = vmul.f32 %v2744, %v2749
      %v2782 = vrot.slane %v2751, 7
      %vm2783 = vcmask 1041409
      %v2784 = vsel %vm2783, %v2782, %v2750
      %v2785 = vrot.slane %v2752, 6
      %vm2786 = vcmask 1042434
      %v2787 = vsel %vm2786, %v2785, %v2784
      %v2788 = vrot.slane %v2753, 5
      %vm2789 = vcmask 1043459
      %v2790 = vsel %vm2789, %v2788, %v2787
      %v2791 = vrot.slane %v2754, 4
      %vm2792 = vcmask 1044484
      %v2793 = vsel %vm2792, %v2791, %v2790
      %v2794 = vrot.slane %v2755, 3
      %vm2795 = vcmask 1045509
      %v2796 = vsel %vm2795, %v2794, %v2793
      %v2797 = vrot.slane %v2756, 2
      %vm2798 = vcmask 1046534
      %v2799 = vsel %vm2798, %v2797, %v2796
      %v2800 = vrot.slane %v2757, 1
      %vm2801 = vcmask 1047559
      %v2802 = vsel %vm2801, %v2800, %v2799
      %v2803 = vrot.slane %v2759, 7
      %v2804 = vsel %vm2783, %v2803, %v2758
      %v2805 = vrot.slane %v2760, 6
      %v2806 = vsel %vm2786, %v2805, %v2804
      %v2807 = vrot.slane %v2761, 5
      %v2808 = vsel %vm2789, %v2807, %v2806
      %v2809 = vrot.slane %v2762, 4
      %v2810 = vsel %vm2792, %v2809, %v2808
      %v2811 = vrot.slane %v2763, 3
      %v2812 = vsel %vm2795, %v2811, %v2810
      %v2813 = vrot.slane %v2764, 2
      %v2814 = vsel %vm2798, %v2813, %v2812
      %v2815 = vrot.slane %v2765, 1
      %v2816 = vsel %vm2801, %v2815, %v2814
      %v2819 = vsel %vm2600, %v2802, 0.0
      %2820 = vadd.xlane.f32.xlu0 %v2819
      %v2821 = vpop.xlane.xlu0 %2820
      %v2822 = vsel %vm2600, %v2816, 0.0
      %2823 = vadd.xlane.f32.xlu0 %v2822
      %v2824 = vpop.xlane.xlu0 %2823
      %v2825 = vld [vmem:[%s4] sm:$0x1]
      %v2827 = vlaneseq
      %v2828 = vshrl.u32 %v2827, 7
      %v2829 = vsub.s32 0, %v2828
      %v2830 = vrot.slane %v2825, %v2829
      %v2832 = vadd.f32 %v2821, %v2830
      %v2833 = vadd.f32 %v2824, %v2830
      %v2834 = vld [vmem:[%s3 + $0x1] sm:$0x1]
      %v2835 = vlaneseq
      %v2836 = vshrl.u32 %v2835, 7
      %v2837 = vsub.s32 0, %v2836
      %v2838 = vrot.slane %v2834, %v2837
      %v2839 = vmul.f32 %v2609, %v2838
      %v2840 = vmul.f32 %v2618, %v2838
      %v2841 = vmul.f32 %v2627, %v2838
      %v2842 = vmul.f32 %v2636, %v2838
      %v2843 = vmul.f32 %v2645, %v2838
      %v2844 = vmul.f32 %v2654, %v2838
      %v2845 = vmul.f32 %v2663, %v2838
      %v2846 = vmul.f32 %v2672, %v2838
      %v2847 = vmul.f32 %v2681, %v2838
      %v2848 = vmul.f32 %v2690, %v2838
      %v2849 = vmul.f32 %v2699, %v2838
      %v2850 = vmul.f32 %v2708, %v2838
      %v2851 = vmul.f32 %v2717, %v2838
      %v2852 = vmul.f32 %v2726, %v2838
      %v2853 = vmul.f32 %v2735, %v2838
      %v2854 = vmul.f32 %v2744, %v2838
      %v2871 = vrot.slane %v2840, 7
      %v2872 = vsel %vm2783, %v2871, %v2839
      %v2873 = vrot.slane %v2841, 6
      %v2874 = vsel %vm2786, %v2873, %v2872
      %v2875 = vrot.slane %v2842, 5
      %v2876 = vsel %vm2789, %v2875, %v2874
      %v2877 = vrot.slane %v2843, 4
      %v2878 = vsel %vm2792, %v2877, %v2876
      %v2879 = vrot.slane %v2844, 3
      %v2880 = vsel %vm2795, %v2879, %v2878
      %v2881 = vrot.slane %v2845, 2
      %v2882 = vsel %vm2798, %v2881, %v2880
      %v2883 = vrot.slane %v2846, 1
      %v2884 = vsel %vm2801, %v2883, %v2882
      %v2885 = vrot.slane %v2848, 7
      %v2886 = vsel %vm2783, %v2885, %v2847
      %v2887 = vrot.slane %v2849, 6
      %v2888 = vsel %vm2786, %v2887, %v2886
      %v2889 = vrot.slane %v2850, 5
      %v2890 = vsel %vm2789, %v2889, %v2888
      %v2891 = vrot.slane %v2851, 4
      %v2892 = vsel %vm2792, %v2891, %v2890
      %v2893 = vrot.slane %v2852, 3
      %v2894 = vsel %vm2795, %v2893, %v2892
      %v2895 = vrot.slane %v2853, 2
      %v2896 = vsel %vm2798, %v2895, %v2894
      %v2897 = vrot.slane %v2854, 1
      %v2898 = vsel %vm2801, %v2897, %v2896
      %v2901 = vsel %vm2600, %v2884, 0.0
      %2902 = vadd.xlane.f32.xlu0 %v2901
      %v2903 = vpop.xlane.xlu0 %2902
      %v2904 = vsel %vm2600, %v2898, 0.0
      %2905 = vadd.xlane.f32.xlu0 %v2904
      %v2906 = vpop.xlane.xlu0 %2905
      %v2907 = vadd.f32 %v2903, %v2830
      %v2908 = vadd.f32 %v2906, %v2830
      %2911 = vrot.lane.b32.xlu0 %v2907, 127
      %v2912 = vpop.permute.xlu0 %2911
      %2913 = vrot.lane.b32.xlu0 %v2908, 127
      %v2914 = vpop.permute.xlu0 %2913
      %v2917 = vmax.f32 %v2832, %v2912
      %v2918 = vmax.f32 %v2833, %v2914
      %v2919 = vsub.f32 %v2832, %v2917
      %v2920 = vsub.f32 %v2833, %v2918
      %v2921 = vmul.f32 %v2919, 1.442695
      %v2922 = vpow.pop %v2921
      %v2923 = vmul.f32 %v2920, 1.442695
      %v2924 = vpow.pop %v2923
      %2927 = vrot.lane.b32.xlu0 %v2917, 1
      %v2928 = vpop.permute.xlu0 %2927
      %2929 = vrot.lane.b32.xlu0 %v2918, 1
      %v2930 = vpop.permute.xlu0 %2929
      %v2933 = vsub.f32 %v2907, %v2928
      %v2934 = vsub.f32 %v2908, %v2930
      %v2935 = vmul.f32 %v2933, 1.442695
      %v2936 = vpow.pop %v2935
      %v2937 = vmul.f32 %v2934, 1.442695
      %v2938 = vpow.pop %v2937
      %2941 = vrot.lane.b32.xlu0 %v2936, 127
      %v2942 = vpop.permute.xlu0 %2941
      %2943 = vrot.lane.b32.xlu0 %v2938, 127
      %v2944 = vpop.permute.xlu0 %2943
      %v2947 = vadd.f32 %v2922, %v2942
      %v2948 = vadd.f32 %v2924, %v2944
      %v2949 = vrcp.pop %v2947
      %v2950 = vmul.f32 %v2922, %v2949
      %v2951 = vrcp.pop %v2948
      %v2952 = vmul.f32 %v2924, %v2951
      %2955 = vrot.lane.b32.xlu0 %v2947, 1
      %v2956 = vpop.permute.xlu0 %2955
      %2957 = vrot.lane.b32.xlu0 %v2948, 1
      %v2958 = vpop.permute.xlu0 %2957
      %v2961 = vrcp.pop %v2956
      %v2962 = vmul.f32 %v2936, %v2961
      %v2963 = vrcp.pop %v2958
      %v2964 = vmul.f32 %v2938, %v2963
      %vm2965 = vcmp.eq.s32.totalorder %v262, 0
      %vm2966 = vcmp.eq.s32.totalorder %v262, 1
      %2968 = vset.pattern.permute.xlu0 1
      %2969 = vperm.xlu0 %2968, %v2962
      %v2970 = vpop.permute.xlu0 %2969
      %2973 = vset.pattern.permute.xlu0 1
      %2974 = vperm.xlu0 %2973, %v2964
      %v2975 = vpop.permute.xlu0 %2974
      %v2977 = vsel %vm2966, %v2970, 0.0
      %v2978 = vsel %vm2966, %v2975, 0.0
      %2980 = vset.pattern.permute.xlu0 0
      %2981 = vperm.xlu0 %2980, %v2950
      %v2982 = vpop.permute.xlu0 %2981
      %2985 = vset.pattern.permute.xlu0 0
      %2986 = vperm.xlu0 %2985, %v2952
      %v2987 = vpop.permute.xlu0 %2986
      %v2989 = vsel %vm2965, %v2982, %v2977
      %v2990 = vsel %vm2965, %v2987, %v2978
      %2991 = vst [vmem:[%s226] sm:$0xff] %v2989
      %2992 = vst [vmem:[%s226 + $0x8] sm:$0xff] %v2990
      %s2993 = smul.u32 2, %s16
      %p2994 = scmp.lt.s32.totalorder %s2993, 7
      %s2995 = scalar_select %p2994, %s2993, 7
      %s2996 = smul.addr %s2995, 8
      %s2997 = scalar_lea.vmem %s5, %s2996
      // Predicated region
      $region41: #{cnn_forward.1} parent=39 // pred_check
        %p2998 = pneg %p144
      $region42: #{cnn_forward.1} parent=39 // pred_check_branch
        %3000 = sbr.rel (%p2998) target = $region44
      $region43: #{cnn_forward.1} parent=39 // pred_region
        %s3001 = smul.u32 2, %s16
      $region44: #{cnn_forward.1} parent=39 // pred_fallthru
        _
    $region40: #{cnn_forward.1} parent=5 // pred_fallthru
      _
    %p3002 = scmp.le.s32.totalorder 2, %s11
    // Predicated region
    $region45: #{cnn_forward.1} parent=5 // pred_check
      %p3003 = pneg %p3002
    $region46: #{cnn_forward.1} parent=5 // pred_check_branch
      %3005 = sbr.rel (%p3003) target = $region48
    $region47: #{cnn_forward.1} parent=5 // pred_region
      %s3006 = ssub.s32 %s11, 2
      // Predicated region
      $region49: #{cnn_forward.1} parent=47 // pred_check
        %p3007 = pneg %p150
      $region50: #{cnn_forward.1} parent=47 // pred_check_branch
        %3009 = sbr.rel (%p3007) target = $region52
      $region51: #{cnn_forward.1} parent=47 // pred_region
        %s3010 = smul.u32 2, %s17
        %p3011 = scmp.lt.s32.totalorder %s3010, 7
        %s3012 = scalar_select %p3011, %s3010, 7
        %s3013 = smul.addr %s3012, 8
        %s3014 = scalar_lea.vmem %s5, %s3013
      $region52: #{cnn_forward.1} parent=47 // pred_fallthru
        _
    $region48: #{cnn_forward.1} parent=5 // pred_fallthru
      _
  $region6: #{cnn_forward.1} parent=0 // loop_footer
    %s15 = sadd.s32 1, %s11
  $region7: #{cnn_forward.1} parent=0 // loop_footer_branch
    %10 = sbr.rel target = $region3
  $region8: #{cnn_forward.1} parent=0 // loop_exit
    _

</llo_original>
